<compile_context>
chip_gen: v5e
topology: v5e:2x2
jax: 0.10.0
libtpu: 0.0.40
codegen_flags: <defaults>
</compile_context>

<pallas_src>
import functools
import math

import jax
import jax.numpy as jnp
from jax.experimental import pallas as pl
from jax.experimental.pallas import tpu as pltpu

EPS = 1e-5  # PyTorch nn.LayerNorm default


def _layer_norm(v, g, b):
    mu = jnp.mean(v, axis=-1, keepdims=True)
    d = v - mu
    var = jnp.mean(d * d, axis=-1, keepdims=True)
    return d * jax.lax.rsqrt(var + EPS) * g + b


def gru_kernel(xf_ref,
               wx_ref, bx_ref, wh_ref, bh_ref,
               gx1_ref, bx1_ref, gx2_ref, bx2_ref,
               gh1_ref, bh1_ref, gh2_ref, bh2_ref,
               out_ref,
               h_scr, g_scr, n_scr):
    """One grid step = one chunk of `tc` timesteps for the fused fwd+bwd batch."""
    tc, b2p, d = xf_ref.shape
    h_dim = out_ref.shape[2]
    h2 = 2 * h_dim

    # Hidden state persists across grid (time-chunk) iterations; zero it once.
    @pl.when(pl.program_id(0) == 0)
    def _():
        h_scr[...] = jnp.zeros_like(h_scr)

    wx = wx_ref[...]
    bx = bx_ref[...]
    wh = wh_ref[...]
    bh = bh_ref[...]

    # ---- Hoisted input projections: one big matmul for the whole chunk ----------
    # (tc*b2p, D) @ (D, 3H)  ->  LNx1 on the rz half, LNx2 on the n half.
    x_all = xf_ref[...].reshape(tc * b2p, d)
    pre = jnp.dot(x_all, wx, preferred_element_type=jnp.float32) + bx
    g_scr[...] = _layer_norm(pre[:, :h2], gx1_ref[...], bx1_ref[...]).reshape(tc, b2p, h2)
    n_scr[...] = _layer_norm(pre[:, h2:], gx2_ref[...], bx2_ref[...]).reshape(tc, b2p, h_dim)

    gh1 = gh1_ref[...]
    bh1 = bh1_ref[...]
    gh2 = gh2_ref[...]
    bh2 = bh2_ref[...]

    # ---- Serial recurrence: only the fused h-path matmul + gate math per step ----
    def step(s, h):
        hpre = jnp.dot(h.astype(wh.dtype), wh,
                       preferred_element_type=jnp.float32) + bh      # (b2p, 3H)
        ghn = _layer_norm(hpre[:, :h2], gh1, bh1)
        nh = _layer_norm(hpre[:, h2:], gh2, bh2)
        gates = jax.nn.sigmoid(g_scr[s] + ghn)                        # (b2p, 2H)
        rt = gates[:, :h_dim]
        zt = gates[:, h_dim:]
        nt = jnp.tanh(n_scr[s] + rt * nh)
        h_new = (1.0 - zt) * nt + zt * h
        out_ref[s] = h_new                                            # full-row store
        return h_new

    h_final = jax.lax.fori_loop(0, tc, step, h_scr[...], unroll=True)
    h_scr[...] = h_final


def init_params(key, input_size, hidden_size, bidirectional=True):
    """Deterministic parameter init mirroring the PyTorch module's __init__."""
    H = hidden_size // 2 if bidirectional else hidden_size

    def linear(key, out_f, in_f):
        kw, kb = jax.random.split(key)
        bound = 1.0 / jnp.sqrt(jnp.float32(in_f))
        w = jax.random.uniform(kw, (out_f, in_f), jnp.float32, -bound, bound)
        b = jax.random.uniform(kb, (out_f,), jnp.float32, -bound, bound)
        return w, b

    ks = jax.random.split(key, 12)
    p = {}
    p["Wxrz_w"], p["Wxrz_b"] = linear(ks[0], 2 * H, input_size)
    p["Whrz_w"], p["Whrz_b"] = linear(ks[1], 2 * H, H)
    p["Wxn_w"], p["Wxn_b"] = linear(ks[2], H, input_size)
    p["Whn_w"], p["Whn_b"] = linear(ks[3], H, H)
    p["LNx1_g"] = 1.0 + 0.1 * jax.random.normal(ks[4], (2 * H,), jnp.float32)
    p["LNx1_b"] = 0.1 * jax.random.normal(ks[5], (2 * H,), jnp.float32)
    p["LNh1_g"] = 1.0 + 0.1 * jax.random.normal(ks[6], (2 * H,), jnp.float32)
    p["LNh1_b"] = 0.1 * jax.random.normal(ks[7], (2 * H,), jnp.float32)
    p["LNx2_g"] = 1.0 + 0.1 * jax.random.normal(ks[8], (H,), jnp.float32)
    p["LNx2_b"] = 0.1 * jax.random.normal(ks[9], (H,), jnp.float32)
    p["LNh2_g"] = 1.0 + 0.1 * jax.random.normal(ks[10], (H,), jnp.float32)
    p["LNh2_b"] = 0.1 * jax.random.normal(ks[11], (H,), jnp.float32)
    return p


def _nbytes(shape, dtype):
    return math.prod(shape) * jnp.dtype(dtype).itemsize


@functools.partial(jax.jit, static_argnames=("time_chunk", "matmul_dtype"))
def gru_forward(x, params, *, time_chunk=4, matmul_dtype=jnp.float32):
    """x: (batch, seq_len, input_size) -> (batch, seq_len, hidden_size)."""
    B, T, D = x.shape
    H = params["Wxn_w"].shape[0]
    H2 = 2 * H

    # Fused fwd+bwd batch, padded to a multiple of 8 sublanes.
    B2 = 2 * B
    B2p = max(8, ((B2 + 7) // 8) * 8)

    # Time-major, with the backward direction's (time-reversed) input stacked on
    # the batch axis:  xf[t, :B] = x[t],  xf[t, B:2B] = x[T-1-t].
    x_tm = jnp.transpose(x, (1, 0, 2)).astype(jnp.float32)          # (T, B, D)
    xf = jnp.concatenate([x_tm, x_tm[::-1]], axis=1)                 # (T, 2B, D)
    if B2p > B2:
        xf = jnp.pad(xf, ((0, 0), (0, B2p - B2), (0, 0)))
    xf = xf.astype(matmul_dtype)

    # Fused weights: [Wxrz | Wxn] -> (D, 3H), [Whrz | Whn] -> (H, 3H).
    wx = jnp.concatenate([params["Wxrz_w"].T, params["Wxn_w"].T], axis=1).astype(matmul_dtype)
    bx = jnp.concatenate([params["Wxrz_b"], params["Wxn_b"]])[None, :].astype(jnp.float32)
    wh = jnp.concatenate([params["Whrz_w"].T, params["Whn_w"].T], axis=1).astype(matmul_dtype)
    bh = jnp.concatenate([params["Whrz_b"], params["Whn_b"]])[None, :].astype(jnp.float32)

    def ln(name):
        return params[name][None, :].astype(jnp.float32)

    const_inputs = [
        wx, bx, wh, bh,
        ln("LNx1_g"), ln("LNx1_b"), ln("LNx2_g"), ln("LNx2_b"),
        ln("LNh1_g"), ln("LNh1_b"), ln("LNh2_g"), ln("LNh2_b"),
    ]

    # Largest divisor of T that is <= time_chunk (keeps the grid exact).
    tc = min(time_chunk, T)
    while T % tc:
        tc -= 1
    grid = (T // tc,)

    def const_spec(a):
        return pl.BlockSpec(a.shape, lambda i: (0, 0))

    # Size the scoped-VMEM limit to the actual buffers (double-buffered pipeline
    # tiles + resident weights + scratch), with generous headroom, capped at the
    # smallest physical VMEM (v7x = 64 MiB).
    buf_bytes = (
        2 * _nbytes((tc, B2p, D), matmul_dtype)
        + 2 * _nbytes((tc, B2p, H), jnp.float32)
        + 2 * sum(_nbytes(a.shape, a.dtype) for a in const_inputs)
        + _nbytes((B2p, H), jnp.float32)
        + _nbytes((tc, B2p, H2), jnp.float32)
        + _nbytes((tc, B2p, H), jnp.float32)
    )
    vmem_limit = int(min(max(4 * buf_bytes, 16 * 2**20), 64 * 2**20))

    out = pl.pallas_call(
        gru_kernel,
        out_shape=jax.ShapeDtypeStruct((T, B2p, H), jnp.float32),
        grid_spec=pltpu.PrefetchScalarGridSpec(
            num_scalar_prefetch=0,
            grid=grid,
            in_specs=[pl.BlockSpec((tc, B2p, D), lambda i: (i, 0, 0))]
                     + [const_spec(a) for a in const_inputs],
            out_specs=pl.BlockSpec((tc, B2p, H), lambda i: (i, 0, 0)),
            scratch_shapes=[
                pltpu.VMEM((B2p, H), jnp.float32),        # carried hidden state
                pltpu.VMEM((tc, B2p, H2), jnp.float32),   # LNx1(x @ Wxrz + b) chunk
                pltpu.VMEM((tc, B2p, H), jnp.float32),    # LNx2(x @ Wxn + b) chunk
            ],
        ),
        compiler_params=pltpu.CompilerParams(
            dimension_semantics=("arbitrary",),           # sequential time recurrence
            vmem_limit_bytes=vmem_limit,
        ),
    )(xf, *const_inputs)

    # TODO(synk): for v7x, the two directions could instead be split across the 2
    # TensorCores (core_map / leading "parallel" direction axis) rather than fused
    # on the batch axis.

    out_f = out[:, :B, :]            # (T, B, H)  forward hidden at time t
    out_b = out[::-1, B:B2, :]       # (T, B, H)  backward hidden, re-aligned to time t
    res = jnp.concatenate([out_f, out_b], axis=-1)       # (T, B, 2H)
    return jnp.transpose(res, (1, 0, 2))                  # (B, T, hidden_size)


def gru_reference(x, params):
    """Pure-JAX replica of the PyTorch forward (for a correctness check)."""
    B, T, _ = x.shape
    H = params["Wxn_w"].shape[0]

    def lnf(v, g, b):
        mu = jnp.mean(v, axis=-1, keepdims=True)
        var = jnp.mean((v - mu) ** 2, axis=-1, keepdims=True)
        return (v - mu) / jnp.sqrt(var + EPS) * g + b

    def recurrence(xt, htm1):
        gx = lnf(xt @ params["Wxrz_w"].T + params["Wxrz_b"], params["LNx1_g"], params["LNx1_b"])
        gh = lnf(htm1 @ params["Whrz_w"].T + params["Whrz_b"], params["LNh1_g"], params["LNh1_b"])
        gates = jax.nn.sigmoid(gx + gh)
        rt, zt = gates[:, :H], gates[:, H:]
        nx = lnf(xt @ params["Wxn_w"].T + params["Wxn_b"], params["LNx2_g"], params["LNx2_b"])
        nh = lnf(htm1 @ params["Whn_w"].T + params["Whn_b"], params["LNh2_g"], params["LNh2_b"])
        nt = jnp.tanh(nx + rt * nh)
        return (1.0 - zt) * nt + zt * htm1

    xt_major = jnp.transpose(x, (1, 0, 2))
    h = jnp.zeros((B, H), jnp.float32)
    fwd = []
    for t in range(T):
        h = recurrence(xt_major[t], h)
        fwd.append(h)
    fwd = jnp.stack(fwd, 0)

    h = jnp.zeros((B, H), jnp.float32)
    bwd = [None] * T
    for t in range(T - 1, -1, -1):
        h = recurrence(xt_major[t], h)
        bwd[t] = h
    bwd = jnp.stack(bwd, 0)

    out = jnp.concatenate([fwd, bwd], axis=-1)
    return jnp.transpose(out, (1, 0, 2))


if __name__ == "__main__":
    batch, seq_len, input_size, hidden_size = 2, 8, 16, 32

    key = jax.random.PRNGKey(0)
    kx, kp = jax.random.split(key)
    x = jax.random.normal(kx, (batch, seq_len, input_size), jnp.float32)
    params = init_params(kp, input_size, hidden_size, bidirectional=True)

    # f32 MXU path: strict check against the pure-JAX reference.
    out = gru_forward(x, params)
    jax.block_until_ready(out)
    assert out.shape == (batch, seq_len, hidden_size), out.shape

    ref = gru_reference(x, params)
    err = float(jnp.max(jnp.abs(out - ref)))
    assert jnp.allclose(out, ref, atol=1e-4, rtol=1e-4), err

    # bf16 MXU path (production dtype on v5e/v6e/v7x): loose sanity bound only,
    # since the reference is f32 and errors compound over the recurrence.
    out_bf16 = gru_forward(x, params, matmul_dtype=jnp.bfloat16)
    jax.block_until_ready(out_bf16)
    err_bf16 = float(jnp.max(jnp.abs(out_bf16 - ref)))
    assert err_bf16 < 1e-1, err_bf16

    print("KERNEL_OK")
</pallas_src>

<mosaic_0001>
module attributes {stable_mosaic.version = 11 : i64} {
  func.func @gru_kernel(%arg0: i32, %arg1: memref<4x8x16xf32, #tpu.memory_space<vmem>>, %arg2: memref<16x48xf32, #tpu.memory_space<vmem>>, %arg3: memref<1x48xf32, #tpu.memory_space<vmem>>, %arg4: memref<16x48xf32, #tpu.memory_space<vmem>>, %arg5: memref<1x48xf32, #tpu.memory_space<vmem>>, %arg6: memref<1x32xf32, #tpu.memory_space<vmem>>, %arg7: memref<1x32xf32, #tpu.memory_space<vmem>>, %arg8: memref<1x16xf32, #tpu.memory_space<vmem>>, %arg9: memref<1x16xf32, #tpu.memory_space<vmem>>, %arg10: memref<1x32xf32, #tpu.memory_space<vmem>>, %arg11: memref<1x32xf32, #tpu.memory_space<vmem>>, %arg12: memref<1x16xf32, #tpu.memory_space<vmem>>, %arg13: memref<1x16xf32, #tpu.memory_space<vmem>>, %arg14: memref<4x8x16xf32, #tpu.memory_space<vmem>>, %arg15: memref<8x16xf32, #tpu.memory_space<vmem>>, %arg16: memref<4x8x32xf32, #tpu.memory_space<vmem>>, %arg17: memref<4x8x16xf32, #tpu.memory_space<vmem>>) attributes {dimension_semantics = [#tpu.dimension_semantics<arbitrary>], iteration_bounds = array<i64: 2>, scalar_prefetch = 0 : i64, scratch_operands = 3 : i64, tpu.core_type = #tpu.core_type<tc>, window_params = [{transform_indices = @transform_0, window_bounds = array<i64: 4, 8, 16>}, {pipeline_mode = #tpu.pipeline_mode<synchronous>, transform_indices = @transform_1, window_bounds = array<i64: 16, 48>}, {pipeline_mode = #tpu.pipeline_mode<synchronous>, transform_indices = @transform_2, window_bounds = array<i64: 1, 48>}, {pipeline_mode = #tpu.pipeline_mode<synchronous>, transform_indices = @transform_3, window_bounds = array<i64: 16, 48>}, {pipeline_mode = #tpu.pipeline_mode<synchronous>, transform_indices = @transform_4, window_bounds = array<i64: 1, 48>}, {pipeline_mode = #tpu.pipeline_mode<synchronous>, transform_indices = @transform_5, window_bounds = array<i64: 1, 32>}, {pipeline_mode = #tpu.pipeline_mode<synchronous>, transform_indices = @transform_6, window_bounds = array<i64: 1, 32>}, {pipeline_mode = #tpu.pipeline_mode<synchronous>, transform_indices = @transform_7, window_bounds = array<i64: 1, 16>}, {pipeline_mode = #tpu.pipeline_mode<synchronous>, transform_indices = @transform_8, window_bounds = array<i64: 1, 16>}, {pipeline_mode = #tpu.pipeline_mode<synchronous>, transform_indices = @transform_9, window_bounds = array<i64: 1, 32>}, {pipeline_mode = #tpu.pipeline_mode<synchronous>, transform_indices = @transform_10, window_bounds = array<i64: 1, 32>}, {pipeline_mode = #tpu.pipeline_mode<synchronous>, transform_indices = @transform_11, window_bounds = array<i64: 1, 16>}, {pipeline_mode = #tpu.pipeline_mode<synchronous>, transform_indices = @transform_12, window_bounds = array<i64: 1, 16>}, {transform_indices = @transform_13, window_bounds = array<i64: 4, 8, 16>}]} {
    %c0_i32 = arith.constant 0 : i32
    %0 = arith.cmpi eq, %arg0, %c0_i32 : i32
    %1 = arith.extui %0 : i1 to i32
    %c0_i32_0 = arith.constant 0 : i32
    %2 = arith.cmpi ne, %1, %c0_i32_0 : i32
    scf.if %2 {
      %cst_124 = arith.constant 0.000000e+00 : f32
      %352 = vector.broadcast %cst_124 : f32 to vector<8x16xf32>
      %c0_125 = arith.constant 0 : index
      %c0_126 = arith.constant 0 : index
      %353 = vector.load %arg15[%c0_125, %c0_126] : memref<8x16xf32, #tpu.memory_space<vmem>>, vector<8x16xf32>
      tpu.vector_store %arg15[%c0_125, %c0_126], %352 {strides = array<i32>} : memref<8x16xf32, #tpu.memory_space<vmem>>, vector<8x16xf32>,
    } else {
    }
    %c0 = arith.constant 0 : index
    %c0_1 = arith.constant 0 : index
    %3 = vector.load %arg2[%c0, %c0_1] : memref<16x48xf32, #tpu.memory_space<vmem>>, vector<16x48xf32>
    %c0_2 = arith.constant 0 : index
    %c0_3 = arith.constant 0 : index
    %4 = vector.load %arg3[%c0_2, %c0_3] : memref<1x48xf32, #tpu.memory_space<vmem>>, vector<1x48xf32>
    %c0_4 = arith.constant 0 : index
    %c0_5 = arith.constant 0 : index
    %5 = vector.load %arg4[%c0_4, %c0_5] : memref<16x48xf32, #tpu.memory_space<vmem>>, vector<16x48xf32>
    %c0_6 = arith.constant 0 : index
    %c0_7 = arith.constant 0 : index
    %6 = vector.load %arg5[%c0_6, %c0_7] : memref<1x48xf32, #tpu.memory_space<vmem>>, vector<1x48xf32>
    %c0_8 = arith.constant 0 : index
    %c0_9 = arith.constant 0 : index
    %c0_10 = arith.constant 0 : index
    %7 = vector.load %arg1[%c0_8, %c0_9, %c0_10] : memref<4x8x16xf32, #tpu.memory_space<vmem>>, vector<4x8x16xf32>
    %8 = vector.shape_cast %7 : vector<4x8x16xf32> to vector<32x16xf32>
    %cst = arith.constant dense<0.000000e+00> : vector<32x48xf32>
    %9 = tpu.matmul %8, %3, %cst {dimension_numbers = #tpu.dot_dimension_numbers<[1], [0], [0], [1], [0, 0, 1, 1], [], []>} : vector<32x16xf32>, vector<16x48xf32>, vector<32x48xf32> -> vector<32x48xf32>
    %10 = vector.broadcast %4 : vector<1x48xf32> to vector<32x48xf32>
    %11 = arith.addf %9, %10 : vector<32x48xf32>
    %12 = vector.extract_strided_slice %11 {offsets = [0, 0], sizes = [32, 32], strides = [1, 1]} : vector<32x48xf32> to vector<32x32xf32>
    %c0_11 = arith.constant 0 : index
    %c0_12 = arith.constant 0 : index
    %13 = vector.load %arg6[%c0_11, %c0_12] : memref<1x32xf32, #tpu.memory_space<vmem>>, vector<1x32xf32>
    %c0_13 = arith.constant 0 : index
    %c0_14 = arith.constant 0 : index
    %14 = vector.load %arg7[%c0_13, %c0_14] : memref<1x32xf32, #tpu.memory_space<vmem>>, vector<1x32xf32>
    %cst_15 = arith.constant dense<0.000000e+00> : vector<32xf32>
    %15 = vector.multi_reduction <add>, %12, %cst_15 [1] : vector<32x32xf32> to vector<32xf32>
    %16 = vector.shape_cast %15 : vector<32xf32> to vector<32x1xf32>
    %cst_16 = arith.constant 3.200000e+01 : f32
    %17 = vector.broadcast %cst_16 : f32 to vector<32x1xf32>
    %18 = arith.divf %16, %17 : vector<32x1xf32>
    %19 = vector.broadcast %18 : vector<32x1xf32> to vector<32x32xf32>
    %20 = arith.subf %12, %19 : vector<32x32xf32>
    %21 = arith.mulf %20, %20 : vector<32x32xf32>
    %cst_17 = arith.constant dense<0.000000e+00> : vector<32xf32>
    %22 = vector.multi_reduction <add>, %21, %cst_17 [1] : vector<32x32xf32> to vector<32xf32>
    %23 = vector.shape_cast %22 : vector<32xf32> to vector<32x1xf32>
    %cst_18 = arith.constant 3.200000e+01 : f32
    %24 = vector.broadcast %cst_18 : f32 to vector<32x1xf32>
    %25 = arith.divf %23, %24 : vector<32x1xf32>
    %cst_19 = arith.constant 9.99999974E-6 : f32
    %26 = vector.broadcast %cst_19 : f32 to vector<32x1xf32>
    %27 = arith.addf %25, %26 : vector<32x1xf32>
    %28 = math.rsqrt %27 : vector<32x1xf32>
    %29 = vector.broadcast %28 : vector<32x1xf32> to vector<32x32xf32>
    %30 = arith.mulf %20, %29 : vector<32x32xf32>
    %31 = vector.broadcast %13 : vector<1x32xf32> to vector<32x32xf32>
    %32 = arith.mulf %30, %31 : vector<32x32xf32>
    %33 = vector.broadcast %14 : vector<1x32xf32> to vector<32x32xf32>
    %34 = arith.addf %32, %33 : vector<32x32xf32>
    %35 = vector.shape_cast %34 : vector<32x32xf32> to vector<4x8x32xf32>
    %c0_20 = arith.constant 0 : index
    %c0_21 = arith.constant 0 : index
    %c0_22 = arith.constant 0 : index
    %36 = vector.load %arg16[%c0_20, %c0_21, %c0_22] : memref<4x8x32xf32, #tpu.memory_space<vmem>>, vector<4x8x32xf32>
    tpu.vector_store %arg16[%c0_20, %c0_21, %c0_22], %35 {strides = array<i32>} : memref<4x8x32xf32, #tpu.memory_space<vmem>>, vector<4x8x32xf32>,
    %37 = vector.extract_strided_slice %11 {offsets = [0, 32], sizes = [32, 16], strides = [1, 1]} : vector<32x48xf32> to vector<32x16xf32>
    %c0_23 = arith.constant 0 : index
    %c0_24 = arith.constant 0 : index
    %38 = vector.load %arg8[%c0_23, %c0_24] : memref<1x16xf32, #tpu.memory_space<vmem>>, vector<1x16xf32>
    %c0_25 = arith.constant 0 : index
    %c0_26 = arith.constant 0 : index
    %39 = vector.load %arg9[%c0_25, %c0_26] : memref<1x16xf32, #tpu.memory_space<vmem>>, vector<1x16xf32>
    %cst_27 = arith.constant dense<0.000000e+00> : vector<32xf32>
    %40 = vector.multi_reduction <add>, %37, %cst_27 [1] : vector<32x16xf32> to vector<32xf32>
    %41 = vector.shape_cast %40 : vector<32xf32> to vector<32x1xf32>
    %cst_28 = arith.constant 1.600000e+01 : f32
    %42 = vector.broadcast %cst_28 : f32 to vector<32x1xf32>
    %43 = arith.divf %41, %42 : vector<32x1xf32>
    %44 = vector.broadcast %43 : vector<32x1xf32> to vector<32x16xf32>
    %45 = arith.subf %37, %44 : vector<32x16xf32>
    %46 = arith.mulf %45, %45 : vector<32x16xf32>
    %cst_29 = arith.constant dense<0.000000e+00> : vector<32xf32>
    %47 = vector.multi_reduction <add>, %46, %cst_29 [1] : vector<32x16xf32> to vector<32xf32>
    %48 = vector.shape_cast %47 : vector<32xf32> to vector<32x1xf32>
    %cst_30 = arith.constant 1.600000e+01 : f32
    %49 = vector.broadcast %cst_30 : f32 to vector<32x1xf32>
    %50 = arith.divf %48, %49 : vector<32x1xf32>
    %cst_31 = arith.constant 9.99999974E-6 : f32
    %51 = vector.broadcast %cst_31 : f32 to vector<32x1xf32>
    %52 = arith.addf %50, %51 : vector<32x1xf32>
    %53 = math.rsqrt %52 : vector<32x1xf32>
    %54 = vector.broadcast %53 : vector<32x1xf32> to vector<32x16xf32>
    %55 = arith.mulf %45, %54 : vector<32x16xf32>
    %56 = vector.broadcast %38 : vector<1x16xf32> to vector<32x16xf32>
    %57 = arith.mulf %55, %56 : vector<32x16xf32>
    %58 = vector.broadcast %39 : vector<1x16xf32> to vector<32x16xf32>
    %59 = arith.addf %57, %58 : vector<32x16xf32>
    %60 = vector.shape_cast %59 : vector<32x16xf32> to vector<4x8x16xf32>
    %c0_32 = arith.constant 0 : index
    %c0_33 = arith.constant 0 : index
    %c0_34 = arith.constant 0 : index
    %61 = vector.load %arg17[%c0_32, %c0_33, %c0_34] : memref<4x8x16xf32, #tpu.memory_space<vmem>>, vector<4x8x16xf32>
    tpu.vector_store %arg17[%c0_32, %c0_33, %c0_34], %60 {strides = array<i32>} : memref<4x8x16xf32, #tpu.memory_space<vmem>>, vector<4x8x16xf32>,
    %c0_35 = arith.constant 0 : index
    %c0_36 = arith.constant 0 : index
    %62 = vector.load %arg10[%c0_35, %c0_36] : memref<1x32xf32, #tpu.memory_space<vmem>>, vector<1x32xf32>
    %c0_37 = arith.constant 0 : index
    %c0_38 = arith.constant 0 : index
    %63 = vector.load %arg11[%c0_37, %c0_38] : memref<1x32xf32, #tpu.memory_space<vmem>>, vector<1x32xf32>
    %c0_39 = arith.constant 0 : index
    %c0_40 = arith.constant 0 : index
    %64 = vector.load %arg12[%c0_39, %c0_40] : memref<1x16xf32, #tpu.memory_space<vmem>>, vector<1x16xf32>
    %c0_41 = arith.constant 0 : index
    %c0_42 = arith.constant 0 : index
    %65 = vector.load %arg13[%c0_41, %c0_42] : memref<1x16xf32, #tpu.memory_space<vmem>>, vector<1x16xf32>
    %c0_43 = arith.constant 0 : index
    %c0_44 = arith.constant 0 : index
    %66 = vector.load %arg15[%c0_43, %c0_44] : memref<8x16xf32, #tpu.memory_space<vmem>>, vector<8x16xf32>
    %c0_i32_45 = arith.constant 0 : i32
    %cst_46 = arith.constant dense<0.000000e+00> : vector<8x48xf32>
    %67 = tpu.matmul %66, %5, %cst_46 {dimension_numbers = #tpu.dot_dimension_numbers<[1], [0], [0], [1], [0, 0, 1, 1], [], []>} : vector<8x16xf32>, vector<16x48xf32>, vector<8x48xf32> -> vector<8x48xf32>
    %68 = vector.broadcast %6 : vector<1x48xf32> to vector<8x48xf32>
    %69 = arith.addf %67, %68 : vector<8x48xf32>
    %70 = vector.extract_strided_slice %69 {offsets = [0, 0], sizes = [8, 32], strides = [1, 1]} : vector<8x48xf32> to vector<8x32xf32>
    %cst_47 = arith.constant dense<0.000000e+00> : vector<8xf32>
    %71 = vector.multi_reduction <add>, %70, %cst_47 [1] : vector<8x32xf32> to vector<8xf32>
    %72 = vector.shape_cast %71 : vector<8xf32> to vector<8x1xf32>
    %cst_48 = arith.constant 3.200000e+01 : f32
    %73 = vector.broadcast %cst_48 : f32 to vector<8x1xf32>
    %74 = arith.divf %72, %73 : vector<8x1xf32>
    %75 = vector.broadcast %74 : vector<8x1xf32> to vector<8x32xf32>
    %76 = arith.subf %70, %75 : vector<8x32xf32>
    %77 = arith.mulf %76, %76 : vector<8x32xf32>
    %cst_49 = arith.constant dense<0.000000e+00> : vector<8xf32>
    %78 = vector.multi_reduction <add>, %77, %cst_49 [1] : vector<8x32xf32> to vector<8xf32>
    %79 = vector.shape_cast %78 : vector<8xf32> to vector<8x1xf32>
    %cst_50 = arith.constant 3.200000e+01 : f32
    %80 = vector.broadcast %cst_50 : f32 to vector<8x1xf32>
    %81 = arith.divf %79, %80 : vector<8x1xf32>
    %cst_51 = arith.constant 9.99999974E-6 : f32
    %82 = vector.broadcast %cst_51 : f32 to vector<8x1xf32>
    %83 = arith.addf %81, %82 : vector<8x1xf32>
    %84 = math.rsqrt %83 : vector<8x1xf32>
    %85 = vector.broadcast %84 : vector<8x1xf32> to vector<8x32xf32>
    %86 = arith.mulf %76, %85 : vector<8x32xf32>
    %87 = vector.broadcast %62 : vector<1x32xf32> to vector<8x32xf32>
    %88 = arith.mulf %86, %87 : vector<8x32xf32>
    %89 = vector.broadcast %63 : vector<1x32xf32> to vector<8x32xf32>
    %90 = arith.addf %88, %89 : vector<8x32xf32>
    %91 = vector.extract_strided_slice %69 {offsets = [0, 32], sizes = [8, 16], strides = [1, 1]} : vector<8x48xf32> to vector<8x16xf32>
    %cst_52 = arith.constant dense<0.000000e+00> : vector<8xf32>
    %92 = vector.multi_reduction <add>, %91, %cst_52 [1] : vector<8x16xf32> to vector<8xf32>
    %93 = vector.shape_cast %92 : vector<8xf32> to vector<8x1xf32>
    %cst_53 = arith.constant 1.600000e+01 : f32
    %94 = vector.broadcast %cst_53 : f32 to vector<8x1xf32>
    %95 = arith.divf %93, %94 : vector<8x1xf32>
    %96 = vector.broadcast %95 : vector<8x1xf32> to vector<8x16xf32>
    %97 = arith.subf %91, %96 : vector<8x16xf32>
    %98 = arith.mulf %97, %97 : vector<8x16xf32>
    %cst_54 = arith.constant dense<0.000000e+00> : vector<8xf32>
    %99 = vector.multi_reduction <add>, %98, %cst_54 [1] : vector<8x16xf32> to vector<8xf32>
    %100 = vector.shape_cast %99 : vector<8xf32> to vector<8x1xf32>
    %cst_55 = arith.constant 1.600000e+01 : f32
    %101 = vector.broadcast %cst_55 : f32 to vector<8x1xf32>
    %102 = arith.divf %100, %101 : vector<8x1xf32>
    %cst_56 = arith.constant 9.99999974E-6 : f32
    %103 = vector.broadcast %cst_56 : f32 to vector<8x1xf32>
    %104 = arith.addf %102, %103 : vector<8x1xf32>
    %105 = math.rsqrt %104 : vector<8x1xf32>
    %106 = vector.broadcast %105 : vector<8x1xf32> to vector<8x16xf32>
    %107 = arith.mulf %97, %106 : vector<8x16xf32>
    %108 = vector.broadcast %64 : vector<1x16xf32> to vector<8x16xf32>
    %109 = arith.mulf %107, %108 : vector<8x16xf32>
    %110 = vector.broadcast %65 : vector<1x16xf32> to vector<8x16xf32>
    %111 = arith.addf %109, %110 : vector<8x16xf32>
    %112 = arith.index_cast %c0_i32_45 : i32 to index
    %c0_57 = arith.constant 0 : index
    %c0_58 = arith.constant 0 : index
    %113 = vector.load %arg16[%112, %c0_57, %c0_58] : memref<4x8x32xf32, #tpu.memory_space<vmem>>, vector<1x8x32xf32>
    %114 = vector.shape_cast %113 : vector<1x8x32xf32> to vector<8x32xf32>
    %115 = arith.addf %114, %90 : vector<8x32xf32>
    %116 = arith.negf %115 : vector<8x32xf32>
    %117 = math.exp %116 : vector<8x32xf32>
    %cst_59 = arith.constant 1.000000e+00 : f32
    %118 = vector.broadcast %cst_59 : f32 to vector<8x32xf32>
    %119 = arith.addf %118, %117 : vector<8x32xf32>
    %120 = arith.divf %118, %119 : vector<8x32xf32>
    %121 = vector.extract_strided_slice %120 {offsets = [0, 0], sizes = [8, 16], strides = [1, 1]} : vector<8x32xf32> to vector<8x16xf32>
    %122 = vector.extract_strided_slice %120 {offsets = [0, 16], sizes = [8, 16], strides = [1, 1]} : vector<8x32xf32> to vector<8x16xf32>
    %123 = arith.index_cast %c0_i32_45 : i32 to index
    %c0_60 = arith.constant 0 : index
    %c0_61 = arith.constant 0 : index
    %124 = vector.load %arg17[%123, %c0_60, %c0_61] : memref<4x8x16xf32, #tpu.memory_space<vmem>>, vector<1x8x16xf32>
    %125 = vector.shape_cast %124 : vector<1x8x16xf32> to vector<8x16xf32>
    %126 = arith.mulf %121, %111 : vector<8x16xf32>
    %127 = arith.addf %125, %126 : vector<8x16xf32>
    %128 = math.tanh %127 : vector<8x16xf32>
    %cst_62 = arith.constant 1.000000e+00 : f32
    %129 = vector.broadcast %cst_62 : f32 to vector<8x16xf32>
    %130 = arith.subf %129, %122 : vector<8x16xf32>
    %131 = arith.mulf %130, %128 : vector<8x16xf32>
    %132 = arith.mulf %122, %66 : vector<8x16xf32>
    %133 = arith.addf %131, %132 : vector<8x16xf32>
    %134 = arith.index_cast %c0_i32_45 : i32 to index
    %c0_63 = arith.constant 0 : index
    %c0_64 = arith.constant 0 : index
    %135 = vector.load %arg14[%134, %c0_63, %c0_64] : memref<4x8x16xf32, #tpu.memory_space<vmem>>, vector<1x8x16xf32>
    %136 = vector.shape_cast %135 : vector<1x8x16xf32> to vector<8x16xf32>
    %137 = vector.shape_cast %133 : vector<8x16xf32> to vector<1x8x16xf32>
    tpu.vector_store %arg14[%134, %c0_63, %c0_64], %137 {strides = array<i32>} : memref<4x8x16xf32, #tpu.memory_space<vmem>>, vector<1x8x16xf32>,
    %c1_i32 = arith.constant 1 : i32
    %cst_65 = arith.constant dense<0.000000e+00> : vector<8x48xf32>
    %138 = tpu.matmul %133, %5, %cst_65 {dimension_numbers = #tpu.dot_dimension_numbers<[1], [0], [0], [1], [0, 0, 1, 1], [], []>} : vector<8x16xf32>, vector<16x48xf32>, vector<8x48xf32> -> vector<8x48xf32>
    %139 = vector.broadcast %6 : vector<1x48xf32> to vector<8x48xf32>
    %140 = arith.addf %138, %139 : vector<8x48xf32>
    %141 = vector.extract_strided_slice %140 {offsets = [0, 0], sizes = [8, 32], strides = [1, 1]} : vector<8x48xf32> to vector<8x32xf32>
    %cst_66 = arith.constant dense<0.000000e+00> : vector<8xf32>
    %142 = vector.multi_reduction <add>, %141, %cst_66 [1] : vector<8x32xf32> to vector<8xf32>
    %143 = vector.shape_cast %142 : vector<8xf32> to vector<8x1xf32>
    %cst_67 = arith.constant 3.200000e+01 : f32
    %144 = vector.broadcast %cst_67 : f32 to vector<8x1xf32>
    %145 = arith.divf %143, %144 : vector<8x1xf32>
    %146 = vector.broadcast %145 : vector<8x1xf32> to vector<8x32xf32>
    %147 = arith.subf %141, %146 : vector<8x32xf32>
    %148 = arith.mulf %147, %147 : vector<8x32xf32>
    %cst_68 = arith.constant dense<0.000000e+00> : vector<8xf32>
    %149 = vector.multi_reduction <add>, %148, %cst_68 [1] : vector<8x32xf32> to vector<8xf32>
    %150 = vector.shape_cast %149 : vector<8xf32> to vector<8x1xf32>
    %cst_69 = arith.constant 3.200000e+01 : f32
    %151 = vector.broadcast %cst_69 : f32 to vector<8x1xf32>
    %152 = arith.divf %150, %151 : vector<8x1xf32>
    %cst_70 = arith.constant 9.99999974E-6 : f32
    %153 = vector.broadcast %cst_70 : f32 to vector<8x1xf32>
    %154 = arith.addf %152, %153 : vector<8x1xf32>
    %155 = math.rsqrt %154 : vector<8x1xf32>
    %156 = vector.broadcast %155 : vector<8x1xf32> to vector<8x32xf32>
    %157 = arith.mulf %147, %156 : vector<8x32xf32>
    %158 = vector.broadcast %62 : vector<1x32xf32> to vector<8x32xf32>
    %159 = arith.mulf %157, %158 : vector<8x32xf32>
    %160 = vector.broadcast %63 : vector<1x32xf32> to vector<8x32xf32>
    %161 = arith.addf %159, %160 : vector<8x32xf32>
    %162 = vector.extract_strided_slice %140 {offsets = [0, 32], sizes = [8, 16], strides = [1, 1]} : vector<8x48xf32> to vector<8x16xf32>
    %cst_71 = arith.constant dense<0.000000e+00> : vector<8xf32>
    %163 = vector.multi_reduction <add>, %162, %cst_71 [1] : vector<8x16xf32> to vector<8xf32>
    %164 = vector.shape_cast %163 : vector<8xf32> to vector<8x1xf32>
    %cst_72 = arith.constant 1.600000e+01 : f32
    %165 = vector.broadcast %cst_72 : f32 to vector<8x1xf32>
    %166 = arith.divf %164, %165 : vector<8x1xf32>
    %167 = vector.broadcast %166 : vector<8x1xf32> to vector<8x16xf32>
    %168 = arith.subf %162, %167 : vector<8x16xf32>
    %169 = arith.mulf %168, %168 : vector<8x16xf32>
    %cst_73 = arith.constant dense<0.000000e+00> : vector<8xf32>
    %170 = vector.multi_reduction <add>, %169, %cst_73 [1] : vector<8x16xf32> to vector<8xf32>
    %171 = vector.shape_cast %170 : vector<8xf32> to vector<8x1xf32>
    %cst_74 = arith.constant 1.600000e+01 : f32
    %172 = vector.broadcast %cst_74 : f32 to vector<8x1xf32>
    %173 = arith.divf %171, %172 : vector<8x1xf32>
    %cst_75 = arith.constant 9.99999974E-6 : f32
    %174 = vector.broadcast %cst_75 : f32 to vector<8x1xf32>
    %175 = arith.addf %173, %174 : vector<8x1xf32>
    %176 = math.rsqrt %175 : vector<8x1xf32>
    %177 = vector.broadcast %176 : vector<8x1xf32> to vector<8x16xf32>
    %178 = arith.mulf %168, %177 : vector<8x16xf32>
    %179 = vector.broadcast %64 : vector<1x16xf32> to vector<8x16xf32>
    %180 = arith.mulf %178, %179 : vector<8x16xf32>
    %181 = vector.broadcast %65 : vector<1x16xf32> to vector<8x16xf32>
    %182 = arith.addf %180, %181 : vector<8x16xf32>
    %183 = arith.index_cast %c1_i32 : i32 to index
    %c0_76 = arith.constant 0 : index
    %c0_77 = arith.constant 0 : index
    %184 = vector.load %arg16[%183, %c0_76, %c0_77] : memref<4x8x32xf32, #tpu.memory_space<vmem>>, vector<1x8x32xf32>
    %185 = vector.shape_cast %184 : vector<1x8x32xf32> to vector<8x32xf32>
    %186 = arith.addf %185, %161 : vector<8x32xf32>
    %187 = arith.negf %186 : vector<8x32xf32>
    %188 = math.exp %187 : vector<8x32xf32>
    %cst_78 = arith.constant 1.000000e+00 : f32
    %189 = vector.broadcast %cst_78 : f32 to vector<8x32xf32>
    %190 = arith.addf %189, %188 : vector<8x32xf32>
    %191 = arith.divf %189, %190 : vector<8x32xf32>
    %192 = vector.extract_strided_slice %191 {offsets = [0, 0], sizes = [8, 16], strides = [1, 1]} : vector<8x32xf32> to vector<8x16xf32>
    %193 = vector.extract_strided_slice %191 {offsets = [0, 16], sizes = [8, 16], strides = [1, 1]} : vector<8x32xf32> to vector<8x16xf32>
    %194 = arith.index_cast %c1_i32 : i32 to index
    %c0_79 = arith.constant 0 : index
    %c0_80 = arith.constant 0 : index
    %195 = vector.load %arg17[%194, %c0_79, %c0_80] : memref<4x8x16xf32, #tpu.memory_space<vmem>>, vector<1x8x16xf32>
    %196 = vector.shape_cast %195 : vector<1x8x16xf32> to vector<8x16xf32>
    %197 = arith.mulf %192, %182 : vector<8x16xf32>
    %198 = arith.addf %196, %197 : vector<8x16xf32>
    %199 = math.tanh %198 : vector<8x16xf32>
    %cst_81 = arith.constant 1.000000e+00 : f32
    %200 = vector.broadcast %cst_81 : f32 to vector<8x16xf32>
    %201 = arith.subf %200, %193 : vector<8x16xf32>
    %202 = arith.mulf %201, %199 : vector<8x16xf32>
    %203 = arith.mulf %193, %133 : vector<8x16xf32>
    %204 = arith.addf %202, %203 : vector<8x16xf32>
    %205 = arith.index_cast %c1_i32 : i32 to index
    %c0_82 = arith.constant 0 : index
    %c0_83 = arith.constant 0 : index
    %206 = vector.load %arg14[%205, %c0_82, %c0_83] : memref<4x8x16xf32, #tpu.memory_space<vmem>>, vector<1x8x16xf32>
    %207 = vector.shape_cast %206 : vector<1x8x16xf32> to vector<8x16xf32>
    %208 = vector.shape_cast %204 : vector<8x16xf32> to vector<1x8x16xf32>
    tpu.vector_store %arg14[%205, %c0_82, %c0_83], %208 {strides = array<i32>} : memref<4x8x16xf32, #tpu.memory_space<vmem>>, vector<1x8x16xf32>,
    %c2_i32 = arith.constant 2 : i32
    %cst_84 = arith.constant dense<0.000000e+00> : vector<8x48xf32>
    %209 = tpu.matmul %204, %5, %cst_84 {dimension_numbers = #tpu.dot_dimension_numbers<[1], [0], [0], [1], [0, 0, 1, 1], [], []>} : vector<8x16xf32>, vector<16x48xf32>, vector<8x48xf32> -> vector<8x48xf32>
    %210 = vector.broadcast %6 : vector<1x48xf32> to vector<8x48xf32>
    %211 = arith.addf %209, %210 : vector<8x48xf32>
    %212 = vector.extract_strided_slice %211 {offsets = [0, 0], sizes = [8, 32], strides = [1, 1]} : vector<8x48xf32> to vector<8x32xf32>
    %cst_85 = arith.constant dense<0.000000e+00> : vector<8xf32>
    %213 = vector.multi_reduction <add>, %212, %cst_85 [1] : vector<8x32xf32> to vector<8xf32>
    %214 = vector.shape_cast %213 : vector<8xf32> to vector<8x1xf32>
    %cst_86 = arith.constant 3.200000e+01 : f32
    %215 = vector.broadcast %cst_86 : f32 to vector<8x1xf32>
    %216 = arith.divf %214, %215 : vector<8x1xf32>
    %217 = vector.broadcast %216 : vector<8x1xf32> to vector<8x32xf32>
    %218 = arith.subf %212, %217 : vector<8x32xf32>
    %219 = arith.mulf %218, %218 : vector<8x32xf32>
    %cst_87 = arith.constant dense<0.000000e+00> : vector<8xf32>
    %220 = vector.multi_reduction <add>, %219, %cst_87 [1] : vector<8x32xf32> to vector<8xf32>
    %221 = vector.shape_cast %220 : vector<8xf32> to vector<8x1xf32>
    %cst_88 = arith.constant 3.200000e+01 : f32
    %222 = vector.broadcast %cst_88 : f32 to vector<8x1xf32>
    %223 = arith.divf %221, %222 : vector<8x1xf32>
    %cst_89 = arith.constant 9.99999974E-6 : f32
    %224 = vector.broadcast %cst_89 : f32 to vector<8x1xf32>
    %225 = arith.addf %223, %224 : vector<8x1xf32>
    %226 = math.rsqrt %225 : vector<8x1xf32>
    %227 = vector.broadcast %226 : vector<8x1xf32> to vector<8x32xf32>
    %228 = arith.mulf %218, %227 : vector<8x32xf32>
    %229 = vector.broadcast %62 : vector<1x32xf32> to vector<8x32xf32>
    %230 = arith.mulf %228, %229 : vector<8x32xf32>
    %231 = vector.broadcast %63 : vector<1x32xf32> to vector<8x32xf32>
    %232 = arith.addf %230, %231 : vector<8x32xf32>
    %233 = vector.extract_strided_slice %211 {offsets = [0, 32], sizes = [8, 16], strides = [1, 1]} : vector<8x48xf32> to vector<8x16xf32>
    %cst_90 = arith.constant dense<0.000000e+00> : vector<8xf32>
    %234 = vector.multi_reduction <add>, %233, %cst_90 [1] : vector<8x16xf32> to vector<8xf32>
    %235 = vector.shape_cast %234 : vector<8xf32> to vector<8x1xf32>
    %cst_91 = arith.constant 1.600000e+01 : f32
    %236 = vector.broadcast %cst_91 : f32 to vector<8x1xf32>
    %237 = arith.divf %235, %236 : vector<8x1xf32>
    %238 = vector.broadcast %237 : vector<8x1xf32> to vector<8x16xf32>
    %239 = arith.subf %233, %238 : vector<8x16xf32>
    %240 = arith.mulf %239, %239 : vector<8x16xf32>
    %cst_92 = arith.constant dense<0.000000e+00> : vector<8xf32>
    %241 = vector.multi_reduction <add>, %240, %cst_92 [1] : vector<8x16xf32> to vector<8xf32>
    %242 = vector.shape_cast %241 : vector<8xf32> to vector<8x1xf32>
    %cst_93 = arith.constant 1.600000e+01 : f32
    %243 = vector.broadcast %cst_93 : f32 to vector<8x1xf32>
    %244 = arith.divf %242, %243 : vector<8x1xf32>
    %cst_94 = arith.constant 9.99999974E-6 : f32
    %245 = vector.broadcast %cst_94 : f32 to vector<8x1xf32>
    %246 = arith.addf %244, %245 : vector<8x1xf32>
    %247 = math.rsqrt %246 : vector<8x1xf32>
    %248 = vector.broadcast %247 : vector<8x1xf32> to vector<8x16xf32>
    %249 = arith.mulf %239, %248 : vector<8x16xf32>
    %250 = vector.broadcast %64 : vector<1x16xf32> to vector<8x16xf32>
    %251 = arith.mulf %249, %250 : vector<8x16xf32>
    %252 = vector.broadcast %65 : vector<1x16xf32> to vector<8x16xf32>
    %253 = arith.addf %251, %252 : vector<8x16xf32>
    %254 = arith.index_cast %c2_i32 : i32 to index
    %c0_95 = arith.constant 0 : index
    %c0_96 = arith.constant 0 : index
    %255 = vector.load %arg16[%254, %c0_95, %c0_96] : memref<4x8x32xf32, #tpu.memory_space<vmem>>, vector<1x8x32xf32>
    %256 = vector.shape_cast %255 : vector<1x8x32xf32> to vector<8x32xf32>
    %257 = arith.addf %256, %232 : vector<8x32xf32>
    %258 = arith.negf %257 : vector<8x32xf32>
    %259 = math.exp %258 : vector<8x32xf32>
    %cst_97 = arith.constant 1.000000e+00 : f32
    %260 = vector.broadcast %cst_97 : f32 to vector<8x32xf32>
    %261 = arith.addf %260, %259 : vector<8x32xf32>
    %262 = arith.divf %260, %261 : vector<8x32xf32>
    %263 = vector.extract_strided_slice %262 {offsets = [0, 0], sizes = [8, 16], strides = [1, 1]} : vector<8x32xf32> to vector<8x16xf32>
    %264 = vector.extract_strided_slice %262 {offsets = [0, 16], sizes = [8, 16], strides = [1, 1]} : vector<8x32xf32> to vector<8x16xf32>
    %265 = arith.index_cast %c2_i32 : i32 to index
    %c0_98 = arith.constant 0 : index
    %c0_99 = arith.constant 0 : index
    %266 = vector.load %arg17[%265, %c0_98, %c0_99] : memref<4x8x16xf32, #tpu.memory_space<vmem>>, vector<1x8x16xf32>
    %267 = vector.shape_cast %266 : vector<1x8x16xf32> to vector<8x16xf32>
    %268 = arith.mulf %263, %253 : vector<8x16xf32>
    %269 = arith.addf %267, %268 : vector<8x16xf32>
    %270 = math.tanh %269 : vector<8x16xf32>
    %cst_100 = arith.constant 1.000000e+00 : f32
    %271 = vector.broadcast %cst_100 : f32 to vector<8x16xf32>
    %272 = arith.subf %271, %264 : vector<8x16xf32>
    %273 = arith.mulf %272, %270 : vector<8x16xf32>
    %274 = arith.mulf %264, %204 : vector<8x16xf32>
    %275 = arith.addf %273, %274 : vector<8x16xf32>
    %276 = arith.index_cast %c2_i32 : i32 to index
    %c0_101 = arith.constant 0 : index
    %c0_102 = arith.constant 0 : index
    %277 = vector.load %arg14[%276, %c0_101, %c0_102] : memref<4x8x16xf32, #tpu.memory_space<vmem>>, vector<1x8x16xf32>
    %278 = vector.shape_cast %277 : vector<1x8x16xf32> to vector<8x16xf32>
    %279 = vector.shape_cast %275 : vector<8x16xf32> to vector<1x8x16xf32>
    tpu.vector_store %arg14[%276, %c0_101, %c0_102], %279 {strides = array<i32>} : memref<4x8x16xf32, #tpu.memory_space<vmem>>, vector<1x8x16xf32>,
    %c3_i32 = arith.constant 3 : i32
    %cst_103 = arith.constant dense<0.000000e+00> : vector<8x48xf32>
    %280 = tpu.matmul %275, %5, %cst_103 {dimension_numbers = #tpu.dot_dimension_numbers<[1], [0], [0], [1], [0, 0, 1, 1], [], []>} : vector<8x16xf32>, vector<16x48xf32>, vector<8x48xf32> -> vector<8x48xf32>
    %281 = vector.broadcast %6 : vector<1x48xf32> to vector<8x48xf32>
    %282 = arith.addf %280, %281 : vector<8x48xf32>
    %283 = vector.extract_strided_slice %282 {offsets = [0, 0], sizes = [8, 32], strides = [1, 1]} : vector<8x48xf32> to vector<8x32xf32>
    %cst_104 = arith.constant dense<0.000000e+00> : vector<8xf32>
    %284 = vector.multi_reduction <add>, %283, %cst_104 [1] : vector<8x32xf32> to vector<8xf32>
    %285 = vector.shape_cast %284 : vector<8xf32> to vector<8x1xf32>
    %cst_105 = arith.constant 3.200000e+01 : f32
    %286 = vector.broadcast %cst_105 : f32 to vector<8x1xf32>
    %287 = arith.divf %285, %286 : vector<8x1xf32>
    %288 = vector.broadcast %287 : vector<8x1xf32> to vector<8x32xf32>
    %289 = arith.subf %283, %288 : vector<8x32xf32>
    %290 = arith.mulf %289, %289 : vector<8x32xf32>
    %cst_106 = arith.constant dense<0.000000e+00> : vector<8xf32>
    %291 = vector.multi_reduction <add>, %290, %cst_106 [1] : vector<8x32xf32> to vector<8xf32>
    %292 = vector.shape_cast %291 : vector<8xf32> to vector<8x1xf32>
    %cst_107 = arith.constant 3.200000e+01 : f32
    %293 = vector.broadcast %cst_107 : f32 to vector<8x1xf32>
    %294 = arith.divf %292, %293 : vector<8x1xf32>
    %cst_108 = arith.constant 9.99999974E-6 : f32
    %295 = vector.broadcast %cst_108 : f32 to vector<8x1xf32>
    %296 = arith.addf %294, %295 : vector<8x1xf32>
    %297 = math.rsqrt %296 : vector<8x1xf32>
    %298 = vector.broadcast %297 : vector<8x1xf32> to vector<8x32xf32>
    %299 = arith.mulf %289, %298 : vector<8x32xf32>
    %300 = vector.broadcast %62 : vector<1x32xf32> to vector<8x32xf32>
    %301 = arith.mulf %299, %300 : vector<8x32xf32>
    %302 = vector.broadcast %63 : vector<1x32xf32> to vector<8x32xf32>
    %303 = arith.addf %301, %302 : vector<8x32xf32>
    %304 = vector.extract_strided_slice %282 {offsets = [0, 32], sizes = [8, 16], strides = [1, 1]} : vector<8x48xf32> to vector<8x16xf32>
    %cst_109 = arith.constant dense<0.000000e+00> : vector<8xf32>
    %305 = vector.multi_reduction <add>, %304, %cst_109 [1] : vector<8x16xf32> to vector<8xf32>
    %306 = vector.shape_cast %305 : vector<8xf32> to vector<8x1xf32>
    %cst_110 = arith.constant 1.600000e+01 : f32
    %307 = vector.broadcast %cst_110 : f32 to vector<8x1xf32>
    %308 = arith.divf %306, %307 : vector<8x1xf32>
    %309 = vector.broadcast %308 : vector<8x1xf32> to vector<8x16xf32>
    %310 = arith.subf %304, %309 : vector<8x16xf32>
    %311 = arith.mulf %310, %310 : vector<8x16xf32>
    %cst_111 = arith.constant dense<0.000000e+00> : vector<8xf32>
    %312 = vector.multi_reduction <add>, %311, %cst_111 [1] : vector<8x16xf32> to vector<8xf32>
    %313 = vector.shape_cast %312 : vector<8xf32> to vector<8x1xf32>
    %cst_112 = arith.constant 1.600000e+01 : f32
    %314 = vector.broadcast %cst_112 : f32 to vector<8x1xf32>
    %315 = arith.divf %313, %314 : vector<8x1xf32>
    %cst_113 = arith.constant 9.99999974E-6 : f32
    %316 = vector.broadcast %cst_113 : f32 to vector<8x1xf32>
    %317 = arith.addf %315, %316 : vector<8x1xf32>
    %318 = math.rsqrt %317 : vector<8x1xf32>
    %319 = vector.broadcast %318 : vector<8x1xf32> to vector<8x16xf32>
    %320 = arith.mulf %310, %319 : vector<8x16xf32>
    %321 = vector.broadcast %64 : vector<1x16xf32> to vector<8x16xf32>
    %322 = arith.mulf %320, %321 : vector<8x16xf32>
    %323 = vector.broadcast %65 : vector<1x16xf32> to vector<8x16xf32>
    %324 = arith.addf %322, %323 : vector<8x16xf32>
    %325 = arith.index_cast %c3_i32 : i32 to index
    %c0_114 = arith.constant 0 : index
    %c0_115 = arith.constant 0 : index
    %326 = vector.load %arg16[%325, %c0_114, %c0_115] : memref<4x8x32xf32, #tpu.memory_space<vmem>>, vector<1x8x32xf32>
    %327 = vector.shape_cast %326 : vector<1x8x32xf32> to vector<8x32xf32>
    %328 = arith.addf %327, %303 : vector<8x32xf32>
    %329 = arith.negf %328 : vector<8x32xf32>
    %330 = math.exp %329 : vector<8x32xf32>
    %cst_116 = arith.constant 1.000000e+00 : f32
    %331 = vector.broadcast %cst_116 : f32 to vector<8x32xf32>
    %332 = arith.addf %331, %330 : vector<8x32xf32>
    %333 = arith.divf %331, %332 : vector<8x32xf32>
    %334 = vector.extract_strided_slice %333 {offsets = [0, 0], sizes = [8, 16], strides = [1, 1]} : vector<8x32xf32> to vector<8x16xf32>
    %335 = vector.extract_strided_slice %333 {offsets = [0, 16], sizes = [8, 16], strides = [1, 1]} : vector<8x32xf32> to vector<8x16xf32>
    %336 = arith.index_cast %c3_i32 : i32 to index
    %c0_117 = arith.constant 0 : index
    %c0_118 = arith.constant 0 : index
    %337 = vector.load %arg17[%336, %c0_117, %c0_118] : memref<4x8x16xf32, #tpu.memory_space<vmem>>, vector<1x8x16xf32>
    %338 = vector.shape_cast %337 : vector<1x8x16xf32> to vector<8x16xf32>
    %339 = arith.mulf %334, %324 : vector<8x16xf32>
    %340 = arith.addf %338, %339 : vector<8x16xf32>
    %341 = math.tanh %340 : vector<8x16xf32>
    %cst_119 = arith.constant 1.000000e+00 : f32
    %342 = vector.broadcast %cst_119 : f32 to vector<8x16xf32>
    %343 = arith.subf %342, %335 : vector<8x16xf32>
    %344 = arith.mulf %343, %341 : vector<8x16xf32>
    %345 = arith.mulf %335, %275 : vector<8x16xf32>
    %346 = arith.addf %344, %345 : vector<8x16xf32>
    %347 = arith.index_cast %c3_i32 : i32 to index
    %c0_120 = arith.constant 0 : index
    %c0_121 = arith.constant 0 : index
    %348 = vector.load %arg14[%347, %c0_120, %c0_121] : memref<4x8x16xf32, #tpu.memory_space<vmem>>, vector<1x8x16xf32>
    %349 = vector.shape_cast %348 : vector<1x8x16xf32> to vector<8x16xf32>
    %350 = vector.shape_cast %346 : vector<8x16xf32> to vector<1x8x16xf32>
    tpu.vector_store %arg14[%347, %c0_120, %c0_121], %350 {strides = array<i32>} : memref<4x8x16xf32, #tpu.memory_space<vmem>>, vector<1x8x16xf32>,
    %c4_i32 = arith.constant 4 : i32
    %c0_122 = arith.constant 0 : index
    %c0_123 = arith.constant 0 : index
    %351 = vector.load %arg15[%c0_122, %c0_123] : memref<8x16xf32, #tpu.memory_space<vmem>>, vector<8x16xf32>
    tpu.vector_store %arg15[%c0_122, %c0_123], %346 {strides = array<i32>} : memref<8x16xf32, #tpu.memory_space<vmem>>, vector<8x16xf32>,
    return
  }
  func.func @transform_0(%arg0: i32) -> (i32, i32, i32) {
    %c0_i32 = arith.constant 0 : i32
    %c0_i32_0 = arith.constant 0 : i32
    %c0_i32_1 = arith.constant 0 : i32
    return %arg0, %c0_i32, %c0_i32_0 : i32, i32, i32
  }
  func.func @transform_1(%arg0: i32) -> (i32, i32) {
    %c0_i32 = arith.constant 0 : i32
    %c0_i32_0 = arith.constant 0 : i32
    %c0_i32_1 = arith.constant 0 : i32
    return %c0_i32, %c0_i32_0 : i32, i32
  }
  func.func @transform_2(%arg0: i32) -> (i32, i32) {
    %c0_i32 = arith.constant 0 : i32
    %c0_i32_0 = arith.constant 0 : i32
    %c0_i32_1 = arith.constant 0 : i32
    return %c0_i32, %c0_i32_0 : i32, i32
  }
  func.func @transform_3(%arg0: i32) -> (i32, i32) {
    %c0_i32 = arith.constant 0 : i32
    %c0_i32_0 = arith.constant 0 : i32
    %c0_i32_1 = arith.constant 0 : i32
    return %c0_i32, %c0_i32_0 : i32, i32
  }
  func.func @transform_4(%arg0: i32) -> (i32, i32) {
    %c0_i32 = arith.constant 0 : i32
    %c0_i32_0 = arith.constant 0 : i32
    %c0_i32_1 = arith.constant 0 : i32
    return %c0_i32, %c0_i32_0 : i32, i32
  }
  func.func @transform_5(%arg0: i32) -> (i32, i32) {
    %c0_i32 = arith.constant 0 : i32
    %c0_i32_0 = arith.constant 0 : i32
    %c0_i32_1 = arith.constant 0 : i32
    return %c0_i32, %c0_i32_0 : i32, i32
  }
  func.func @transform_6(%arg0: i32) -> (i32, i32) {
    %c0_i32 = arith.constant 0 : i32
    %c0_i32_0 = arith.constant 0 : i32
    %c0_i32_1 = arith.constant 0 : i32
    return %c0_i32, %c0_i32_0 : i32, i32
  }
  func.func @transform_7(%arg0: i32) -> (i32, i32) {
    %c0_i32 = arith.constant 0 : i32
    %c0_i32_0 = arith.constant 0 : i32
    %c0_i32_1 = arith.constant 0 : i32
    return %c0_i32, %c0_i32_0 : i32, i32
  }
  func.func @transform_8(%arg0: i32) -> (i32, i32) {
    %c0_i32 = arith.constant 0 : i32
    %c0_i32_0 = arith.constant 0 : i32
    %c0_i32_1 = arith.constant 0 : i32
    return %c0_i32, %c0_i32_0 : i32, i32
  }
  func.func @transform_9(%arg0: i32) -> (i32, i32) {
    %c0_i32 = arith.constant 0 : i32
    %c0_i32_0 = arith.constant 0 : i32
    %c0_i32_1 = arith.constant 0 : i32
    return %c0_i32, %c0_i32_0 : i32, i32
  }
  func.func @transform_10(%arg0: i32) -> (i32, i32) {
    %c0_i32 = arith.constant 0 : i32
    %c0_i32_0 = arith.constant 0 : i32
    %c0_i32_1 = arith.constant 0 : i32
    return %c0_i32, %c0_i32_0 : i32, i32
  }
  func.func @transform_11(%arg0: i32) -> (i32, i32) {
    %c0_i32 = arith.constant 0 : i32
    %c0_i32_0 = arith.constant 0 : i32
    %c0_i32_1 = arith.constant 0 : i32
    return %c0_i32, %c0_i32_0 : i32, i32
  }
  func.func @transform_12(%arg0: i32) -> (i32, i32) {
    %c0_i32 = arith.constant 0 : i32
    %c0_i32_0 = arith.constant 0 : i32
    %c0_i32_1 = arith.constant 0 : i32
    return %c0_i32, %c0_i32_0 : i32, i32
  }
  func.func @transform_13(%arg0: i32) -> (i32, i32, i32) {
    %c0_i32 = arith.constant 0 : i32
    %c0_i32_0 = arith.constant 0 : i32
    %c0_i32_1 = arith.constant 0 : i32
    return %arg0, %c0_i32, %c0_i32_0 : i32, i32, i32
  }
}

</mosaic_0001>

<llo_original>
// kernel: gru_forward.1
$region0: #{gru_forward.1}
  #allocation0 [shape = 'u32[]', space=smem, size = 0x4, offset = 0x4, fixed_abs, tag = 'smem constant byte address 0x4 - core index']
  #allocation1 [shape = 'u32[72,128]{1,0:T(1,128)}', space=vmem, size = 0x9000, scoped, tag = 'internal scratch']
  #allocation2 [shape = 'f32[8,16]{1,0:T(8,128)}', space=vmem, size = 0x1000, scoped, tag = 'scratch operand']
  #allocation3 [shape = 'f32[4,8,32]{2,1,0:T(8,128)}', space=vmem, size = 0x4000, scoped, tag = 'scratch operand']
  #allocation4 [shape = 'f32[4,8,16]{2,1,0:T(8,128)}', space=vmem, size = 0x4000, scoped, tag = 'scratch operand']
  %s0 = inlined_call_operand.vmem [shape: f32[8,8,16], index: 0, kind: input, shape index: {}]
  %s1 = inlined_call_operand.vmem [shape: f32[16,48], index: 1, kind: input, shape index: {}]
  %s2 = inlined_call_operand.vmem [shape: f32[1,48], index: 2, kind: input, shape index: {}]
  %s3 = inlined_call_operand.vmem [shape: f32[16,48], index: 3, kind: input, shape index: {}]
  %s4 = inlined_call_operand.vmem [shape: f32[1,48], index: 4, kind: input, shape index: {}]
  %s5 = inlined_call_operand.vmem [shape: f32[1,32], index: 5, kind: input, shape index: {}]
  %s6 = inlined_call_operand.vmem [shape: f32[1,32], index: 6, kind: input, shape index: {}]
  %s7 = inlined_call_operand.vmem [shape: f32[1,16], index: 7, kind: input, shape index: {}]
  %s8 = inlined_call_operand.vmem [shape: f32[1,16], index: 8, kind: input, shape index: {}]
  %s9 = inlined_call_operand.vmem [shape: f32[1,32], index: 9, kind: input, shape index: {}]
  %s10 = inlined_call_operand.vmem [shape: f32[1,32], index: 10, kind: input, shape index: {}]
  %s11 = inlined_call_operand.vmem [shape: f32[1,16], index: 11, kind: input, shape index: {}]
  %s12 = inlined_call_operand.vmem [shape: f32[1,16], index: 12, kind: input, shape index: {}]
  %s13 = inlined_call_operand.vmem [shape: f32[8,8,16], index: 13, kind: output, shape index: {}]
  %s14 = sld [smem:[#allocation0]]
  $region89: #{gru_forward.1} parent=0
    _
  %s16 = ssub.s32 1, %s14
  %s17 = scalar_select 0, %s16, %s14
  loop: start=0, step=1, limit=4
  $region2: #{gru_forward.1} parent=0 // loop_pre_header
    _
  $region3: #{gru_forward.1} parent=0 // loop_header
    %s19 = sphi 0, %s23
    %p20 = scmp.ge.s32.totalorder %s19, 4
    %s29 = sphi 0, %s31
    %s32 = sphi 0, %s29
    %s33 = sphi 0, %s32
    %s49 = sphi 0, %s33
    %s53 = sphi 0, %s53
    %s55 = sphi 0, %s53
    %s56 = sphi 0, %s55
    %s70 = sphi 0, %s56
    %s74 = sphi 0, %s74
    %s76 = sphi 0, %s74
    %s77 = sphi 0, %s76
    %s91 = sphi 0, %s77
    %s95 = sphi 0, %s95
    %s97 = sphi 0, %s95
    %s98 = sphi 0, %s97
    %s112 = sphi 0, %s98
    %s116 = sphi 0, %s116
    %s118 = sphi 0, %s116
    %s119 = sphi 0, %s118
    %s133 = sphi 0, %s119
    %s137 = sphi 0, %s137
    %s139 = sphi 0, %s137
    %s140 = sphi 0, %s139
    %s154 = sphi 0, %s140
    %s158 = sphi 0, %s158
    %s160 = sphi 0, %s158
    %s161 = sphi 0, %s160
    %s175 = sphi 0, %s161
    %s179 = sphi 0, %s179
    %s181 = sphi 0, %s179
    %s182 = sphi 0, %s181
    %s196 = sphi 0, %s182
    %s200 = sphi 0, %s200
    %s202 = sphi 0, %s200
    %s203 = sphi 0, %s202
    %s217 = sphi 0, %s203
    %s221 = sphi 0, %s221
    %s223 = sphi 0, %s221
    %s224 = sphi 0, %s223
    %s238 = sphi 0, %s224
    %s242 = sphi 0, %s242
    %s244 = sphi 0, %s242
    %s245 = sphi 0, %s244
    %s259 = sphi 0, %s245
    %s263 = sphi 0, %s263
    %s265 = sphi 0, %s263
    %s266 = sphi 0, %s265
    %s280 = sphi 0, %s266
    %s284 = sphi 0, %s284
    %s286 = sphi 0, %s284
    %s287 = sphi 0, %s286
    %s301 = sphi 0, %s287
    %s307 = sphi 0, %s309
    %s310 = sphi 0, %s307
    %s311 = sphi 0, %s310
    %s327 = sphi 0, %s311
  $region4: #{gru_forward.1} parent=0 // loop_header_branch
    %22 = sbr.rel (%p20) target = $region8
  $region5: #{gru_forward.1} parent=0 // loop_body
    %s24 = ssub.s32 %s19, 1
    %s25 = ssub.s32 %s19, 2
    %s26 = sadd.s32 %s19, 1
    %s27 = ssub.s32 %s19, %s26
    %p28 = scmp.eq.s32.totalorder %s27, 0
    %s30 = sadd.s32 %s29, 1
    %s31 = scalar_select %p28, %s29, %s30
    %p34 = pneg %p28
    %p35 = scmp.eq.s32.totalorder %s19, 1
    %p36 = por %p34, %p35
    %p37 = scmp.ne.s32.totalorder %s29, %s32
    %p38 = scmp.eq.s32.totalorder %s19, 0
    %p39 = por %p37, %p38
    %p40 = scmp.ne.s32.totalorder %s29, %s32
    %p41 = scmp.eq.s32.totalorder %s24, 1
    %p42 = por %p40, %p41
    %p43 = scmp.ne.s32.totalorder %s32, %s33
    %p44 = scmp.eq.s32.totalorder %s24, 0
    %p45 = por %p43, %p44
    %p46 = scmp.ne.s32.totalorder %s32, %s33
    %p47 = scmp.eq.s32.totalorder %s25, 1
    %p48 = por %p46, %p47
    %p50 = scmp.ne.s32.totalorder %s33, %s49
    %p51 = scmp.eq.s32.totalorder %s25, 0
    %p52 = por %p50, %p51
    %s54 = sadd.s32 %s53, 1
    %p57 = scmp.eq.s32.totalorder %s19, 1
    %p58 = scmp.ne.s32.totalorder %s53, %s55
    %p59 = scmp.eq.s32.totalorder %s19, 0
    %p60 = por %p58, %p59
    %p61 = scmp.ne.s32.totalorder %s53, %s55
    %p62 = scmp.eq.s32.totalorder %s24, 1
    %p63 = por %p61, %p62
    %p64 = scmp.ne.s32.totalorder %s55, %s56
    %p65 = scmp.eq.s32.totalorder %s24, 0
    %p66 = por %p64, %p65
    %p67 = scmp.ne.s32.totalorder %s55, %s56
    %p68 = scmp.eq.s32.totalorder %s25, 1
    %p69 = por %p67, %p68
    %p71 = scmp.ne.s32.totalorder %s56, %s70
    %p72 = scmp.eq.s32.totalorder %s25, 0
    %p73 = por %p71, %p72
    %s75 = sadd.s32 %s74, 1
    %p78 = scmp.eq.s32.totalorder %s19, 1
    %p79 = scmp.ne.s32.totalorder %s74, %s76
    %p80 = scmp.eq.s32.totalorder %s19, 0
    %p81 = por %p79, %p80
    %p82 = scmp.ne.s32.totalorder %s74, %s76
    %p83 = scmp.eq.s32.totalorder %s24, 1
    %p84 = por %p82, %p83
    %p85 = scmp.ne.s32.totalorder %s76, %s77
    %p86 = scmp.eq.s32.totalorder %s24, 0
    %p87 = por %p85, %p86
    %p88 = scmp.ne.s32.totalorder %s76, %s77
    %p89 = scmp.eq.s32.totalorder %s25, 1
    %p90 = por %p88, %p89
    %p92 = scmp.ne.s32.totalorder %s77, %s91
    %p93 = scmp.eq.s32.totalorder %s25, 0
    %p94 = por %p92, %p93
    %s96 = sadd.s32 %s95, 1
    %p99 = scmp.eq.s32.totalorder %s19, 1
    %p100 = scmp.ne.s32.totalorder %s95, %s97
    %p101 = scmp.eq.s32.totalorder %s19, 0
    %p102 = por %p100, %p101
    %p103 = scmp.ne.s32.totalorder %s95, %s97
    %p104 = scmp.eq.s32.totalorder %s24, 1
    %p105 = por %p103, %p104
    %p106 = scmp.ne.s32.totalorder %s97, %s98
    %p107 = scmp.eq.s32.totalorder %s24, 0
    %p108 = por %p106, %p107
    %p109 = scmp.ne.s32.totalorder %s97, %s98
    %p110 = scmp.eq.s32.totalorder %s25, 1
    %p111 = por %p109, %p110
    %p113 = scmp.ne.s32.totalorder %s98, %s112
    %p114 = scmp.eq.s32.totalorder %s25, 0
    %p115 = por %p113, %p114
    %s117 = sadd.s32 %s116, 1
    %p120 = scmp.eq.s32.totalorder %s19, 1
    %p121 = scmp.ne.s32.totalorder %s116, %s118
    %p122 = scmp.eq.s32.totalorder %s19, 0
    %p123 = por %p121, %p122
    %p124 = scmp.ne.s32.totalorder %s116, %s118
    %p125 = scmp.eq.s32.totalorder %s24, 1
    %p126 = por %p124, %p125
    %p127 = scmp.ne.s32.totalorder %s118, %s119
    %p128 = scmp.eq.s32.totalorder %s24, 0
    %p129 = por %p127, %p128
    %p130 = scmp.ne.s32.totalorder %s118, %s119
    %p131 = scmp.eq.s32.totalorder %s25, 1
    %p132 = por %p130, %p131
    %p134 = scmp.ne.s32.totalorder %s119, %s133
    %p135 = scmp.eq.s32.totalorder %s25, 0
    %p136 = por %p134, %p135
    %s138 = sadd.s32 %s137, 1
    %p141 = scmp.eq.s32.totalorder %s19, 1
    %p142 = scmp.ne.s32.totalorder %s137, %s139
    %p143 = scmp.eq.s32.totalorder %s19, 0
    %p144 = por %p142, %p143
    %p145 = scmp.ne.s32.totalorder %s137, %s139
    %p146 = scmp.eq.s32.totalorder %s24, 1
    %p147 = por %p145, %p146
    %p148 = scmp.ne.s32.totalorder %s139, %s140
    %p149 = scmp.eq.s32.totalorder %s24, 0
    %p150 = por %p148, %p149
    %p151 = scmp.ne.s32.totalorder %s139, %s140
    %p152 = scmp.eq.s32.totalorder %s25, 1
    %p153 = por %p151, %p152
    %p155 = scmp.ne.s32.totalorder %s140, %s154
    %p156 = scmp.eq.s32.totalorder %s25, 0
    %p157 = por %p155, %p156
    %s159 = sadd.s32 %s158, 1
    %p162 = scmp.eq.s32.totalorder %s19, 1
    %p163 = scmp.ne.s32.totalorder %s158, %s160
    %p164 = scmp.eq.s32.totalorder %s19, 0
    %p165 = por %p163, %p164
    %p166 = scmp.ne.s32.totalorder %s158, %s160
    %p167 = scmp.eq.s32.totalorder %s24, 1
    %p168 = por %p166, %p167
    %p169 = scmp.ne.s32.totalorder %s160, %s161
    %p170 = scmp.eq.s32.totalorder %s24, 0
    %p171 = por %p169, %p170
    %p172 = scmp.ne.s32.totalorder %s160, %s161
    %p173 = scmp.eq.s32.totalorder %s25, 1
    %p174 = por %p172, %p173
    %p176 = scmp.ne.s32.totalorder %s161, %s175
    %p177 = scmp.eq.s32.totalorder %s25, 0
    %p178 = por %p176, %p177
    %s180 = sadd.s32 %s179, 1
    %p183 = scmp.eq.s32.totalorder %s19, 1
    %p184 = scmp.ne.s32.totalorder %s179, %s181
    %p185 = scmp.eq.s32.totalorder %s19, 0
    %p186 = por %p184, %p185
    %p187 = scmp.ne.s32.totalorder %s179, %s181
    %p188 = scmp.eq.s32.totalorder %s24, 1
    %p189 = por %p187, %p188
    %p190 = scmp.ne.s32.totalorder %s181, %s182
    %p191 = scmp.eq.s32.totalorder %s24, 0
    %p192 = por %p190, %p191
    %p193 = scmp.ne.s32.totalorder %s181, %s182
    %p194 = scmp.eq.s32.totalorder %s25, 1
    %p195 = por %p193, %p194
    %p197 = scmp.ne.s32.totalorder %s182, %s196
    %p198 = scmp.eq.s32.totalorder %s25, 0
    %p199 = por %p197, %p198
    %s201 = sadd.s32 %s200, 1
    %p204 = scmp.eq.s32.totalorder %s19, 1
    %p205 = scmp.ne.s32.totalorder %s200, %s202
    %p206 = scmp.eq.s32.totalorder %s19, 0
    %p207 = por %p205, %p206
    %p208 = scmp.ne.s32.totalorder %s200, %s202
    %p209 = scmp.eq.s32.totalorder %s24, 1
    %p210 = por %p208, %p209
    %p211 = scmp.ne.s32.totalorder %s202, %s203
    %p212 = scmp.eq.s32.totalorder %s24, 0
    %p213 = por %p211, %p212
    %p214 = scmp.ne.s32.totalorder %s202, %s203
    %p215 = scmp.eq.s32.totalorder %s25, 1
    %p216 = por %p214, %p215
    %p218 = scmp.ne.s32.totalorder %s203, %s217
    %p219 = scmp.eq.s32.totalorder %s25, 0
    %p220 = por %p218, %p219
    %s222 = sadd.s32 %s221, 1
    %p225 = scmp.eq.s32.totalorder %s19, 1
    %p226 = scmp.ne.s32.totalorder %s221, %s223
    %p227 = scmp.eq.s32.totalorder %s19, 0
    %p228 = por %p226, %p227
    %p229 = scmp.ne.s32.totalorder %s221, %s223
    %p230 = scmp.eq.s32.totalorder %s24, 1
    %p231 = por %p229, %p230
    %p232 = scmp.ne.s32.totalorder %s223, %s224
    %p233 = scmp.eq.s32.totalorder %s24, 0
    %p234 = por %p232, %p233
    %p235 = scmp.ne.s32.totalorder %s223, %s224
    %p236 = scmp.eq.s32.totalorder %s25, 1
    %p237 = por %p235, %p236
    %p239 = scmp.ne.s32.totalorder %s224, %s238
    %p240 = scmp.eq.s32.totalorder %s25, 0
    %p241 = por %p239, %p240
    %s243 = sadd.s32 %s242, 1
    %p246 = scmp.eq.s32.totalorder %s19, 1
    %p247 = scmp.ne.s32.totalorder %s242, %s244
    %p248 = scmp.eq.s32.totalorder %s19, 0
    %p249 = por %p247, %p248
    %p250 = scmp.ne.s32.totalorder %s242, %s244
    %p251 = scmp.eq.s32.totalorder %s24, 1
    %p252 = por %p250, %p251
    %p253 = scmp.ne.s32.totalorder %s244, %s245
    %p254 = scmp.eq.s32.totalorder %s24, 0
    %p255 = por %p253, %p254
    %p256 = scmp.ne.s32.totalorder %s244, %s245
    %p257 = scmp.eq.s32.totalorder %s25, 1
    %p258 = por %p256, %p257
    %p260 = scmp.ne.s32.totalorder %s245, %s259
    %p261 = scmp.eq.s32.totalorder %s25, 0
    %p262 = por %p260, %p261
    %s264 = sadd.s32 %s263, 1
    %p267 = scmp.eq.s32.totalorder %s19, 1
    %p268 = scmp.ne.s32.totalorder %s263, %s265
    %p269 = scmp.eq.s32.totalorder %s19, 0
    %p270 = por %p268, %p269
    %p271 = scmp.ne.s32.totalorder %s263, %s265
    %p272 = scmp.eq.s32.totalorder %s24, 1
    %p273 = por %p271, %p272
    %p274 = scmp.ne.s32.totalorder %s265, %s266
    %p275 = scmp.eq.s32.totalorder %s24, 0
    %p276 = por %p274, %p275
    %p277 = scmp.ne.s32.totalorder %s265, %s266
    %p278 = scmp.eq.s32.totalorder %s25, 1
    %p279 = por %p277, %p278
    %p281 = scmp.ne.s32.totalorder %s266, %s280
    %p282 = scmp.eq.s32.totalorder %s25, 0
    %p283 = por %p281, %p282
    %s285 = sadd.s32 %s284, 1
    %p288 = scmp.eq.s32.totalorder %s19, 1
    %p289 = scmp.ne.s32.totalorder %s284, %s286
    %p290 = scmp.eq.s32.totalorder %s19, 0
    %p291 = por %p289, %p290
    %p292 = scmp.ne.s32.totalorder %s284, %s286
    %p293 = scmp.eq.s32.totalorder %s24, 1
    %p294 = por %p292, %p293
    %p295 = scmp.ne.s32.totalorder %s286, %s287
    %p296 = scmp.eq.s32.totalorder %s24, 0
    %p297 = por %p295, %p296
    %p298 = scmp.ne.s32.totalorder %s286, %s287
    %p299 = scmp.eq.s32.totalorder %s25, 1
    %p300 = por %p298, %p299
    %p302 = scmp.ne.s32.totalorder %s287, %s301
    %p303 = scmp.eq.s32.totalorder %s25, 0
    %p304 = por %p302, %p303
    %s305 = ssub.s32 %s19, %s26
    %p306 = scmp.eq.s32.totalorder %s305, 0
    %s308 = sadd.s32 %s307, 1
    %s309 = scalar_select %p306, %s307, %s308
    %p312 = pneg %p306
    %p313 = scmp.eq.s32.totalorder %s19, 1
    %p314 = por %p312, %p313
    %p315 = scmp.ne.s32.totalorder %s307, %s310
    %p316 = scmp.eq.s32.totalorder %s19, 0
    %p317 = por %p315, %p316
    %p318 = scmp.ne.s32.totalorder %s307, %s310
    %p319 = scmp.eq.s32.totalorder %s24, 1
    %p320 = por %p318, %p319
    %p321 = scmp.ne.s32.totalorder %s310, %s311
    %p322 = scmp.eq.s32.totalorder %s24, 0
    %p323 = por %p321, %p322
    %p324 = scmp.ne.s32.totalorder %s310, %s311
    %p325 = scmp.eq.s32.totalorder %s25, 1
    %p326 = por %p324, %p325
    %p328 = scmp.ne.s32.totalorder %s311, %s327
    %p329 = scmp.eq.s32.totalorder %s25, 0
    %p330 = por %p328, %p329
    %p331 = scmp.le.s32.totalorder 1, %s19
    %p332 = scmp.lt.s32.totalorder %s19, 3
    %p333 = pnand %p331, %p332
    %p334 = pneg %p333
    // Predicated region
    $region9: #{gru_forward.1} parent=5 // pred_check
      _
    $region10: #{gru_forward.1} parent=5 // pred_check_branch
      %336 = sbr.rel (%p333) target = $region12
    $region11: #{gru_forward.1} parent=5 // pred_region
      %s337 = ssub.s32 %s19, 1
      // Predicated region
      $region13: #{gru_forward.1} parent=11 // pred_check
        %p338 = pneg %p66
      $region14: #{gru_forward.1} parent=11 // pred_check_branch
        %340 = sbr.rel (%p338) target = $region16
      $region15: #{gru_forward.1} parent=11 // pred_region
        _
      $region16: #{gru_forward.1} parent=11 // pred_fallthru
        _
      // Predicated region
      $region17: #{gru_forward.1} parent=11 // pred_check
        %p341 = pneg %p87
      $region18: #{gru_forward.1} parent=11 // pred_check_branch
        %343 = sbr.rel (%p341) target = $region20
      $region19: #{gru_forward.1} parent=11 // pred_region
        _
      $region20: #{gru_forward.1} parent=11 // pred_fallthru
        _
      // Predicated region
      $region21: #{gru_forward.1} parent=11 // pred_check
        %p344 = pneg %p108
      $region22: #{gru_forward.1} parent=11 // pred_check_branch
        %346 = sbr.rel (%p344) target = $region24
      $region23: #{gru_forward.1} parent=11 // pred_region
        _
      $region24: #{gru_forward.1} parent=11 // pred_fallthru
        _
      // Predicated region
      $region25: #{gru_forward.1} parent=11 // pred_check
        %p347 = pneg %p129
      $region26: #{gru_forward.1} parent=11 // pred_check_branch
        %349 = sbr.rel (%p347) target = $region28
      $region27: #{gru_forward.1} parent=11 // pred_region
        _
      $region28: #{gru_forward.1} parent=11 // pred_fallthru
        _
      // Predicated region
      $region29: #{gru_forward.1} parent=11 // pred_check
        %p350 = pneg %p150
      $region30: #{gru_forward.1} parent=11 // pred_check_branch
        %352 = sbr.rel (%p350) target = $region32
      $region31: #{gru_forward.1} parent=11 // pred_region
        _
      $region32: #{gru_forward.1} parent=11 // pred_fallthru
        _
      // Predicated region
      $region33: #{gru_forward.1} parent=11 // pred_check
        %p353 = pneg %p171
      $region34: #{gru_forward.1} parent=11 // pred_check_branch
        %355 = sbr.rel (%p353) target = $region36
      $region35: #{gru_forward.1} parent=11 // pred_region
        _
      $region36: #{gru_forward.1} parent=11 // pred_fallthru
        _
      // Predicated region
      $region37: #{gru_forward.1} parent=11 // pred_check
        %p356 = pneg %p192
      $region38: #{gru_forward.1} parent=11 // pred_check_branch
        %358 = sbr.rel (%p356) target = $region40
      $region39: #{gru_forward.1} parent=11 // pred_region
        _
      $region40: #{gru_forward.1} parent=11 // pred_fallthru
        _
      // Predicated region
      $region41: #{gru_forward.1} parent=11 // pred_check
        %p359 = pneg %p213
      $region42: #{gru_forward.1} parent=11 // pred_check_branch
        %361 = sbr.rel (%p359) target = $region44
      $region43: #{gru_forward.1} parent=11 // pred_region
        _
      $region44: #{gru_forward.1} parent=11 // pred_fallthru
        _
      // Predicated region
      $region45: #{gru_forward.1} parent=11 // pred_check
        %p362 = pneg %p234
      $region46: #{gru_forward.1} parent=11 // pred_check_branch
        %364 = sbr.rel (%p362) target = $region48
      $region47: #{gru_forward.1} parent=11 // pred_region
        _
      $region48: #{gru_forward.1} parent=11 // pred_fallthru
        _
      // Predicated region
      $region49: #{gru_forward.1} parent=11 // pred_check
        %p365 = pneg %p255
      $region50: #{gru_forward.1} parent=11 // pred_check_branch
        %367 = sbr.rel (%p365) target = $region52
      $region51: #{gru_forward.1} parent=11 // pred_region
        _
      $region52: #{gru_forward.1} parent=11 // pred_fallthru
        _
      // Predicated region
      $region53: #{gru_forward.1} parent=11 // pred_check
        %p368 = pneg %p276
      $region54: #{gru_forward.1} parent=11 // pred_check_branch
        %370 = sbr.rel (%p368) target = $region56
      $region55: #{gru_forward.1} parent=11 // pred_region
        _
      $region56: #{gru_forward.1} parent=11 // pred_fallthru
        _
      // Predicated region
      $region57: #{gru_forward.1} parent=11 // pred_check
        %p371 = pneg %p297
      $region58: #{gru_forward.1} parent=11 // pred_check_branch
        %373 = sbr.rel (%p371) target = $region60
      $region59: #{gru_forward.1} parent=11 // pred_region
        _
      $region60: #{gru_forward.1} parent=11 // pred_fallthru
        _
    $region12: #{gru_forward.1} parent=5 // pred_fallthru
      _
    %p374 = scmp.lt.s32.totalorder %s19, 2
    // Predicated region
    $region61: #{gru_forward.1} parent=5 // pred_check
      %p375 = pneg %p374
    $region62: #{gru_forward.1} parent=5 // pred_check_branch
      %377 = sbr.rel (%p375) target = $region64
    $region63: #{gru_forward.1} parent=5 // pred_region
      // Predicated region
      $region65: #{gru_forward.1} parent=63 // pred_check
        %p378 = pneg %p39
      $region66: #{gru_forward.1} parent=63 // pred_check_branch
        %380 = sbr.rel (%p378) target = $region68
      $region67: #{gru_forward.1} parent=63 // pred_region
        %s381 = smul.u32 4, %s19
        %p382 = scmp.lt.s32.totalorder %s381, 7
        %s383 = scalar_select %p382, %s381, 7
        %s384 = smul.addr %s383, 8
        %s385 = scalar_lea.vmem %s0, %s384
        %s386 = smul.u32 4, %s19
      $region68: #{gru_forward.1} parent=63 // pred_fallthru
        _
    $region64: #{gru_forward.1} parent=5 // pred_fallthru
      _
    %p387 = scmp.le.s32.totalorder 1, %s19
    %p388 = scmp.lt.s32.totalorder %s19, 3
    %p389 = pnand %p387, %p388
    %p390 = pneg %p389
    // Predicated region
    $region69: #{gru_forward.1} parent=5 // pred_check
      _
    $region70: #{gru_forward.1} parent=5 // pred_check_branch
      %392 = sbr.rel (%p389) target = $region72
    $region71: #{gru_forward.1} parent=5 // pred_region
      %s393 = ssub.s32 %s19, 1
      %s394 = smul.u32 4, %s24
      %p395 = scmp.lt.s32.totalorder %s394, 7
      %s396 = scalar_select %p395, %s394, 7
      %s397 = smul.addr %s396, 8
      %s398 = scalar_lea.vmem %s0, %s397
      %p399 = pneg %p45
      %p400 = pneg %p42
      %p401 = pneg %p66
      %p402 = pneg %p63
      %p403 = pneg %p87
      %p404 = pneg %p84
      %p405 = pneg %p108
      %p406 = pneg %p105
      %p407 = pneg %p129
      %p408 = pneg %p126
      %p409 = pneg %p150
      %p410 = pneg %p147
      %p411 = pneg %p171
      %p412 = pneg %p168
      %p413 = pneg %p192
      %p414 = pneg %p189
      %p415 = pneg %p213
      %p416 = pneg %p210
      %p417 = pneg %p234
      %p418 = pneg %p231
      %p419 = pneg %p255
      %p420 = pneg %p252
      %p421 = pneg %p276
      %p422 = pneg %p273
      %p423 = pneg %p297
      %p424 = pneg %p294
      %p425 = pneg %p323
      %p426 = pneg %p320
      %s427 = smul.u32 4, %s24
      %p428 = scmp.lt.s32.totalorder %s427, 7
      %s429 = scalar_select %p428, %s427, 7
      %s430 = smul.addr %s429, 8
      %s431 = scalar_lea.vmem %s13, %s430
      %s432 = smul.u32 4, %s24
      %p433 = scmp.lt.s32.totalorder %s432, 7
      %s434 = scalar_select %p433, %s432, 7
      %s435 = smul.addr %s434, 8
      %s436 = scalar_lea.vmem %s0, %s435
      %s437 = smul.u32 4, %s24
      %s438 = smul.u32 4, %s24
      %p439 = scmp.lt.s32.totalorder %s438, 7
      %s440 = scalar_select %p439, %s438, 7
      %s441 = smul.addr %s440, 8
      %s442 = scalar_lea.vmem %s13, %s441
      %s443 = smul.u32 4, %s24
      %p444 = scmp.eq.s32.totalorder %s24, 0
      // Predicated region
      $region73: #{gru_forward.1} parent=71 // pred_check
        %p445 = pneg %p444
      $region74: #{gru_forward.1} parent=71 // pred_check_branch
        %447 = sbr.rel (%p445) target = $region76
      $region75: #{gru_forward.1} parent=71 // pred_region
        %vm448 = vcmask 130048
        %449 = vst.msk [vmem:[#allocation2] sm:$0xff] %vm448, 0.0
      $region76: #{gru_forward.1} parent=71 // pred_fallthru
        _
      %v450 = vld [vmem:[%s1] sm:$0xff]
      %v451 = vld [vmem:[%s1 + $0x8] sm:$0xff]
      %v452 = vld [vmem:[%s2] sm:$0x1]
      %v453 = vld [vmem:[%s3] sm:$0xff]
      %v454 = vld [vmem:[%s3 + $0x8] sm:$0xff]
      %v455 = vld [vmem:[%s4] sm:$0x1]
      %v456 = vld [vmem:[%s436] sm:$0xff]
      %v457 = vld [vmem:[%s436 + $0x8] sm:$0xff]
      %v458 = vld [vmem:[%s436 + $0x10] sm:$0xff]
      %v459 = vld [vmem:[%s436 + $0x18] sm:$0xff]
      %v461 = vperm.slane %v452, 0
      %vm463 = vcmask 130048
      %v465 = vsel %vm463, %v456, 0
      %v468 = vsel %vm463, %v457, 0
      %v471 = vsel %vm463, %v458, 0
      %v474 = vsel %vm463, %v459, 0
      %476 = vmatpush.msra.mxu0 0.0
      %477 = vmatpush.msra.mxu0 0.0
      %478 = vmatpush.msra.mxu0 0.0
      %479 = vmatpush.msra.mxu0 0.0
      %480 = vmatpush.msra.mxu0 0.0
      %481 = vmatpush.msra.mxu0 0.0
      %482 = vmatpush.msra.mxu0 0.0
      %483 = vmatpush.msra.mxu0 0.0
      %484 = vmatpush.msra.mxu0 0.0
      %485 = vmatpush.msra.mxu0 0.0
      %486 = vmatpush.msra.mxu0 0.0
      %487 = vmatpush.msra.mxu0 0.0
      %488 = vmatpush.msra.mxu0 0.0
      %489 = vmatpush.msra.mxu0 0.0
      %490 = vmatpush.msra.mxu0 %v451
      %491 = vmatpush.msra.mxu0 %v450
      %492 = vmatmul.f32.gmra.mxu0 %v465
      %v493 = vpop.f32.mrf.mxu0
      %v494 = vadd.f32 %v461, %v493
      %495 = vmatmul.f32.gmra.mxu0 %v468
      %v496 = vpop.f32.mrf.mxu0
      %v497 = vadd.f32 %v461, %v496
      %498 = vmatmul.f32.gmra.mxu0 %v471
      %v499 = vpop.f32.mrf.mxu0
      %v500 = vadd.f32 %v461, %v499
      %501 = vmatmul.f32.gmra.mxu0 %v474
      %v502 = vpop.f32.mrf.mxu0
      %v503 = vadd.f32 %v461, %v502
      %504 = vdwg.mxu0
      %v505 = vld [vmem:[%s5] sm:$0x1]
      %v506 = vld [vmem:[%s6] sm:$0x1]
      %vm507 = vcmask 261120
      %v508 = vsel %vm507, %v494, 0.0
      %509 = vadd.xlane.f32.xlu0 %v508
      %v510 = vpop.xlane.xlu0 %509
      %v511 = vsel %vm507, %v497, 0.0
      %512 = vadd.xlane.f32.xlu0 %v511
      %v513 = vpop.xlane.xlu0 %512
      %v514 = vsel %vm507, %v500, 0.0
      %515 = vadd.xlane.f32.xlu0 %v514
      %v516 = vpop.xlane.xlu0 %515
      %v517 = vsel %vm507, %v503, 0.0
      %518 = vadd.xlane.f32.xlu0 %v517
      %v519 = vpop.xlane.xlu0 %518
      %v520 = vrcp.pop 32.0
      %v521 = vmul.f32 32.0, %v520
      %v522 = vsub.f32 1.0, %v521
      %v523 = vmul.f32 %v520, %v522
      %v524 = vadd.f32 %v520, %v523
      %vm525 = vweird.f32 %v520
      %v526 = vsel %vm525, %v520, %v524
      %v527 = vmul.f32 %v510, %v526
      %v528 = vmul.f32 %v513, %v526
      %v529 = vmul.f32 %v516, %v526
      %v530 = vmul.f32 %v519, %v526
      %v531 = vsub.f32 %v494, %v527
      %v532 = vsub.f32 %v497, %v528
      %v533 = vsub.f32 %v500, %v529
      %v534 = vsub.f32 %v503, %v530
      %v535 = vmul.f32 %v531, %v531
      %v536 = vmul.f32 %v532, %v532
      %v537 = vmul.f32 %v533, %v533
      %v538 = vmul.f32 %v534, %v534
      %v539 = vsel %vm507, %v535, 0.0
      %540 = vadd.xlane.f32.xlu0 %v539
      %v541 = vpop.xlane.xlu0 %540
      %v542 = vsel %vm507, %v536, 0.0
      %543 = vadd.xlane.f32.xlu0 %v542
      %v544 = vpop.xlane.xlu0 %543
      %v545 = vsel %vm507, %v537, 0.0
      %546 = vadd.xlane.f32.xlu0 %v545
      %v547 = vpop.xlane.xlu0 %546
      %v548 = vsel %vm507, %v538, 0.0
      %549 = vadd.xlane.f32.xlu0 %v548
      %v550 = vpop.xlane.xlu0 %549
      %v551 = vmul.f32 %v541, %v526
      %v552 = vmul.f32 %v544, %v526
      %v553 = vmul.f32 %v547, %v526
      %v554 = vmul.f32 %v550, %v526
      %v555 = vadd.f32 %v551, 1e-05
      %v556 = vadd.f32 %v552, 1e-05
      %v557 = vadd.f32 %v553, 1e-05
      %v558 = vadd.f32 %v554, 1e-05
      %v559 = vrsqrt.pop %v555
      %v560 = vmul.f32 %v559, %v555
      %v561 = vmul.f32 %v560, %v559
      %v562 = vmul.f32 0.5, %v561
      %v563 = vsub.f32 1.5, %v562
      %v564 = vmul.f32 %v559, %v563
      %vm565 = vweird.f32 %v555
      %vm566 = vweird.f32 %v559
      %vm567 = vmor %vm565, %vm566
      %v568 = vsel %vm567, %v559, %v564
      %v569 = vrsqrt.pop %v556
      %v570 = vmul.f32 %v569, %v556
      %v571 = vmul.f32 %v570, %v569
      %v572 = vmul.f32 0.5, %v571
      %v573 = vsub.f32 1.5, %v572
      %v574 = vmul.f32 %v569, %v573
      %vm575 = vweird.f32 %v556
      %vm576 = vweird.f32 %v569
      %vm577 = vmor %vm575, %vm576
      %v578 = vsel %vm577, %v569, %v574
      %v579 = vrsqrt.pop %v557
      %v580 = vmul.f32 %v579, %v557
      %v581 = vmul.f32 %v580, %v579
      %v582 = vmul.f32 0.5, %v581
      %v583 = vsub.f32 1.5, %v582
      %v584 = vmul.f32 %v579, %v583
      %vm585 = vweird.f32 %v557
      %vm586 = vweird.f32 %v579
      %vm587 = vmor %vm585, %vm586
      %v588 = vsel %vm587, %v579, %v584
      %v589 = vrsqrt.pop %v558
      %v590 = vmul.f32 %v589, %v558
      %v591 = vmul.f32 %v590, %v589
      %v592 = vmul.f32 0.5, %v591
      %v593 = vsub.f32 1.5, %v592
      %v594 = vmul.f32 %v589, %v593
      %vm595 = vweird.f32 %v558
      %vm596 = vweird.f32 %v589
      %vm597 = vmor %vm595, %vm596
      %v598 = vsel %vm597, %v589, %v594
      %v599 = vmul.f32 %v531, %v568
      %v600 = vmul.f32 %v532, %v578
      %v601 = vmul.f32 %v533, %v588
      %v602 = vmul.f32 %v534, %v598
      %v604 = vperm.slane %v505, 0
      %v606 = vmul.f32 %v599, %v604
      %v607 = vmul.f32 %v600, %v604
      %v608 = vmul.f32 %v601, %v604
      %v609 = vmul.f32 %v602, %v604
      %v611 = vperm.slane %v506, 0
      %v613 = vadd.f32 %v606, %v611
      %v614 = vadd.f32 %v607, %v611
      %v615 = vadd.f32 %v608, %v611
      %v616 = vadd.f32 %v609, %v611
      %617 = vst.msk [vmem:[#allocation3] sm:$0xff] %vm507, %v613
      %618 = vst.msk [vmem:[#allocation3 + $0x8] sm:$0xff] %vm507, %v614
      %619 = vst.msk [vmem:[#allocation3 + $0x10] sm:$0xff] %vm507, %v615
      %620 = vst.msk [vmem:[#allocation3 + $0x18] sm:$0xff] %vm507, %v616
      %v621 = vld [vmem:[%s7] sm:$0x1]
      %v622 = vld [vmem:[%s8] sm:$0x1]
      %627 = vrot.lane.b32.xlu0 %v494, 96
      %v628 = vpop.permute.xlu0 %627
      %629 = vrot.lane.b32.xlu0 %v497, 96
      %v630 = vpop.permute.xlu0 %629
      %631 = vrot.lane.b32.xlu0 %v500, 96
      %v632 = vpop.permute.xlu0 %631
      %633 = vrot.lane.b32.xlu0 %v503, 96
      %v634 = vpop.permute.xlu0 %633
      %v639 = vsel %vm463, %v628, 0.0
      %640 = vadd.xlane.f32.xlu0 %v639
      %v641 = vpop.xlane.xlu0 %640
      %v642 = vsel %vm463, %v630, 0.0
      %643 = vadd.xlane.f32.xlu0 %v642
      %v644 = vpop.xlane.xlu0 %643
      %v645 = vsel %vm463, %v632, 0.0
      %646 = vadd.xlane.f32.xlu0 %v645
      %v647 = vpop.xlane.xlu0 %646
      %v648 = vsel %vm463, %v634, 0.0
      %649 = vadd.xlane.f32.xlu0 %v648
      %v650 = vpop.xlane.xlu0 %649
      %v651 = vrcp.pop 16.0
      %v652 = vmul.f32 16.0, %v651
      %v653 = vsub.f32 1.0, %v652
      %v654 = vmul.f32 %v651, %v653
      %v655 = vadd.f32 %v651, %v654
      %vm656 = vweird.f32 %v651
      %v657 = vsel %vm656, %v651, %v655
      %v658 = vmul.f32 %v641, %v657
      %v659 = vmul.f32 %v644, %v657
      %v660 = vmul.f32 %v647, %v657
      %v661 = vmul.f32 %v650, %v657
      %v662 = vsub.f32 %v494, %v658
      %v663 = vsub.f32 %v497, %v659
      %v664 = vsub.f32 %v500, %v660
      %v665 = vsub.f32 %v503, %v661
      %v666 = vmul.f32 %v662, %v662
      %v667 = vmul.f32 %v663, %v663
      %v668 = vmul.f32 %v664, %v664
      %v669 = vmul.f32 %v665, %v665
      %674 = vrot.lane.b32.xlu0 %v666, 96
      %v675 = vpop.permute.xlu0 %674
      %676 = vrot.lane.b32.xlu0 %v667, 96
      %v677 = vpop.permute.xlu0 %676
      %678 = vrot.lane.b32.xlu0 %v668, 96
      %v679 = vpop.permute.xlu0 %678
      %680 = vrot.lane.b32.xlu0 %v669, 96
      %v681 = vpop.permute.xlu0 %680
      %v686 = vsel %vm463, %v675, 0.0
      %687 = vadd.xlane.f32.xlu0 %v686
      %v688 = vpop.xlane.xlu0 %687
      %v689 = vsel %vm463, %v677, 0.0
      %690 = vadd.xlane.f32.xlu0 %v689
      %v691 = vpop.xlane.xlu0 %690
      %v692 = vsel %vm463, %v679, 0.0
      %693 = vadd.xlane.f32.xlu0 %v692
      %v694 = vpop.xlane.xlu0 %693
      %v695 = vsel %vm463, %v681, 0.0
      %696 = vadd.xlane.f32.xlu0 %v695
      %v697 = vpop.xlane.xlu0 %696
      %v698 = vmul.f32 %v688, %v657
      %v699 = vmul.f32 %v691, %v657
      %v700 = vmul.f32 %v694, %v657
      %v701 = vmul.f32 %v697, %v657
      %v702 = vadd.f32 %v698, 1e-05
      %v703 = vadd.f32 %v699, 1e-05
      %v704 = vadd.f32 %v700, 1e-05
      %v705 = vadd.f32 %v701, 1e-05
      %v706 = vrsqrt.pop %v702
      %v707 = vmul.f32 %v706, %v702
      %v708 = vmul.f32 %v707, %v706
      %v709 = vmul.f32 0.5, %v708
      %v710 = vsub.f32 1.5, %v709
      %v711 = vmul.f32 %v706, %v710
      %vm712 = vweird.f32 %v702
      %vm713 = vweird.f32 %v706
      %vm714 = vmor %vm712, %vm713
      %v715 = vsel %vm714, %v706, %v711
      %v716 = vrsqrt.pop %v703
      %v717 = vmul.f32 %v716, %v703
      %v718 = vmul.f32 %v717, %v716
      %v719 = vmul.f32 0.5, %v718
      %v720 = vsub.f32 1.5, %v719
      %v721 = vmul.f32 %v716, %v720
      %vm722 = vweird.f32 %v703
      %vm723 = vweird.f32 %v716
      %vm724 = vmor %vm722, %vm723
      %v725 = vsel %vm724, %v716, %v721
      %v726 = vrsqrt.pop %v704
      %v727 = vmul.f32 %v726, %v704
      %v728 = vmul.f32 %v727, %v726
      %v729 = vmul.f32 0.5, %v728
      %v730 = vsub.f32 1.5, %v729
      %v731 = vmul.f32 %v726, %v730
      %vm732 = vweird.f32 %v704
      %vm733 = vweird.f32 %v726
      %vm734 = vmor %vm732, %vm733
      %v735 = vsel %vm734, %v726, %v731
      %v736 = vrsqrt.pop %v705
      %v737 = vmul.f32 %v736, %v705
      %v738 = vmul.f32 %v737, %v736
      %v739 = vmul.f32 0.5, %v738
      %v740 = vsub.f32 1.5, %v739
      %v741 = vmul.f32 %v736, %v740
      %vm742 = vweird.f32 %v705
      %vm743 = vweird.f32 %v736
      %vm744 = vmor %vm742, %vm743
      %v745 = vsel %vm744, %v736, %v741
      %v746 = vmul.f32 %v662, %v715
      %v747 = vmul.f32 %v663, %v725
      %v748 = vmul.f32 %v664, %v735
      %v749 = vmul.f32 %v665, %v745
      %v751 = vperm.slane %v621, 0
      %752 = vrot.lane.b32.xlu0 %v751, 32
      %v753 = vpop.permute.xlu0 %752
      %v755 = vmul.f32 %v746, %v753
      %v756 = vmul.f32 %v747, %v753
      %v757 = vmul.f32 %v748, %v753
      %v758 = vmul.f32 %v749, %v753
      %v760 = vperm.slane %v622, 0
      %761 = vrot.lane.b32.xlu0 %v760, 32
      %v762 = vpop.permute.xlu0 %761
      %v764 = vadd.f32 %v755, %v762
      %v765 = vadd.f32 %v756, %v762
      %v766 = vadd.f32 %v757, %v762
      %v767 = vadd.f32 %v758, %v762
      %772 = vrot.lane.b32.xlu0 %v764, 96
      %v773 = vpop.permute.xlu0 %772
      %774 = vrot.lane.b32.xlu0 %v765, 96
      %v775 = vpop.permute.xlu0 %774
      %776 = vrot.lane.b32.xlu0 %v766, 96
      %v777 = vpop.permute.xlu0 %776
      %778 = vrot.lane.b32.xlu0 %v767, 96
      %v779 = vpop.permute.xlu0 %778
      %784 = vst.msk [vmem:[#allocation4] sm:$0xff] %vm463, %v773
      %785 = vst.msk [vmem:[#allocation4 + $0x8] sm:$0xff] %vm463, %v775
      %786 = vst.msk [vmem:[#allocation4 + $0x10] sm:$0xff] %vm463, %v777
      %787 = vst.msk [vmem:[#allocation4 + $0x18] sm:$0xff] %vm463, %v779
      %v788 = vld [vmem:[%s9] sm:$0x1]
      %v789 = vld [vmem:[%s10] sm:$0x1]
      %v790 = vld [vmem:[%s11] sm:$0x1]
      %v791 = vld [vmem:[%s12] sm:$0x1]
      %v792 = vld [vmem:[#allocation2] sm:$0xff]
      %v794 = vperm.slane %v455, 0
      %v797 = vsel %vm463, %v792, 0
      %799 = vmatpush.msra.mxu0 0.0
      %800 = vmatpush.msra.mxu0 0.0
      %801 = vmatpush.msra.mxu0 0.0
      %802 = vmatpush.msra.mxu0 0.0
      %803 = vmatpush.msra.mxu0 0.0
      %804 = vmatpush.msra.mxu0 0.0
      %805 = vmatpush.msra.mxu0 0.0
      %806 = vmatpush.msra.mxu0 0.0
      %807 = vmatpush.msra.mxu0 0.0
      %808 = vmatpush.msra.mxu0 0.0
      %809 = vmatpush.msra.mxu0 0.0
      %810 = vmatpush.msra.mxu0 0.0
      %811 = vmatpush.msra.mxu0 0.0
      %812 = vmatpush.msra.mxu0 0.0
      %813 = vmatpush.msra.mxu0 %v454
      %814 = vmatpush.msra.mxu0 %v453
      %815 = vmatmul.f32.gmra.mxu0 %v797
      %v816 = vpop.f32.mrf.mxu0
      %v817 = vadd.f32 %v794, %v816
      %818 = vdwg.mxu0
      %v819 = vsel %vm507, %v817, 0.0
      %820 = vadd.xlane.f32.xlu0 %v819
      %v821 = vpop.xlane.xlu0 %820
      %v822 = vmul.f32 %v821, %v526
      %v823 = vsub.f32 %v817, %v822
      %v824 = vmul.f32 %v823, %v823
      %v825 = vsel %vm507, %v824, 0.0
      %826 = vadd.xlane.f32.xlu0 %v825
      %v827 = vpop.xlane.xlu0 %826
      %v828 = vmul.f32 %v827, %v526
      %v829 = vadd.f32 %v828, 1e-05
      %v830 = vrsqrt.pop %v829
      %v831 = vmul.f32 %v830, %v829
      %v832 = vmul.f32 %v831, %v830
      %v833 = vmul.f32 0.5, %v832
      %v834 = vsub.f32 1.5, %v833
      %v835 = vmul.f32 %v830, %v834
      %vm836 = vweird.f32 %v829
      %vm837 = vweird.f32 %v830
      %vm838 = vmor %vm836, %vm837
      %v839 = vsel %vm838, %v830, %v835
      %v840 = vmul.f32 %v823, %v839
      %v842 = vperm.slane %v788, 0
      %v844 = vmul.f32 %v840, %v842
      %v846 = vperm.slane %v789, 0
      %v848 = vadd.f32 %v844, %v846
      %850 = vrot.lane.b32.xlu0 %v817, 96
      %v851 = vpop.permute.xlu0 %850
      %v853 = vsel %vm463, %v851, 0.0
      %854 = vadd.xlane.f32.xlu0 %v853
      %v855 = vpop.xlane.xlu0 %854
      %v856 = vmul.f32 %v855, %v657
      %v857 = vsub.f32 %v817, %v856
      %v858 = vmul.f32 %v857, %v857
      %860 = vrot.lane.b32.xlu0 %v858, 96
      %v861 = vpop.permute.xlu0 %860
      %v863 = vsel %vm463, %v861, 0.0
      %864 = vadd.xlane.f32.xlu0 %v863
      %v865 = vpop.xlane.xlu0 %864
      %v866 = vmul.f32 %v865, %v657
      %v867 = vadd.f32 %v866, 1e-05
      %v868 = vrsqrt.pop %v867
      %v869 = vmul.f32 %v868, %v867
      %v870 = vmul.f32 %v869, %v868
      %v871 = vmul.f32 0.5, %v870
      %v872 = vsub.f32 1.5, %v871
      %v873 = vmul.f32 %v868, %v872
      %vm874 = vweird.f32 %v867
      %vm875 = vweird.f32 %v868
      %vm876 = vmor %vm874, %vm875
      %v877 = vsel %vm876, %v868, %v873
      %v878 = vmul.f32 %v857, %v877
      %v880 = vperm.slane %v790, 0
      %881 = vrot.lane.b32.xlu0 %v880, 32
      %v882 = vpop.permute.xlu0 %881
      %v884 = vmul.f32 %v878, %v882
      %v886 = vperm.slane %v791, 0
      %887 = vrot.lane.b32.xlu0 %v886, 32
      %v888 = vpop.permute.xlu0 %887
      %v890 = vadd.f32 %v884, %v888
      %v891 = vld [vmem:[#allocation3] sm:$0xff]
      %v892 = vadd.f32 %v891, %v848
      %v893 = vxor.u32 %v892, 2147483648
      %v894 = vmul.f32 %v893, 1.442695
      %v895 = vpow.pop %v894
      %v896 = vadd.f32 %v895, 1.0
      %v897 = vrcp.pop %v896
      %v898 = vmul.f32 %v896, %v897
      %v899 = vsub.f32 1.0, %v898
      %v900 = vmul.f32 %v897, %v899
      %v901 = vadd.f32 %v897, %v900
      %vm902 = vweird.f32 %v896
      %vm903 = vweird.f32 %v897
      %vm904 = vmor %vm902, %vm903
      %v905 = vsel %vm904, %v897, %v901
      %v906 = vand.u32 2147483647, %v896
      %vm907 = vcmp.eq.f32.partialorder %v906, 8.507059e+37
      %v908 = vand.u32 %v896, 2147483648
      %v909 = vor.u32 1.1754944e-38, %v908
      %v910 = vsel %vm907, %v909, %v905
      %v911 = vmul.f32 1.0, %v910
      %v912 = vld [vmem:[#allocation4] sm:$0xff]
      %914 = vrot.lane.b32.xlu0 %v890, 96
      %v915 = vpop.permute.xlu0 %914
      %v917 = vmul.f32 %v911, %v915
      %v918 = vadd.f32 %v912, %v917
      %v919 = vtanh.pop %v918
      %v920 = vsub.f32 1.0, %v911
      %922 = vrot.lane.b32.xlu0 %v919, 16
      %v923 = vpop.permute.xlu0 %922
      %v925 = vmul.f32 %v920, %v923
      %926 = vrot.lane.b32.xlu0 %v792, 16
      %v927 = vpop.permute.xlu0 %926
      %v929 = vmul.f32 %v911, %v927
      %v930 = vadd.f32 %v925, %v929
      %932 = vrot.lane.b32.xlu0 %v930, 112
      %v933 = vpop.permute.xlu0 %932
      %935 = vst.msk [vmem:[%s442] sm:$0xff] %vm463, %v933
      %v936 = vsel %vm463, %v933, 0
      %938 = vmatpush.msra.mxu0 0.0
      %939 = vmatpush.msra.mxu0 0.0
      %940 = vmatpush.msra.mxu0 0.0
      %941 = vmatpush.msra.mxu0 0.0
      %942 = vmatpush.msra.mxu0 0.0
      %943 = vmatpush.msra.mxu0 0.0
      %944 = vmatpush.msra.mxu0 0.0
      %945 = vmatpush.msra.mxu0 0.0
      %946 = vmatpush.msra.mxu0 0.0
      %947 = vmatpush.msra.mxu0 0.0
      %948 = vmatpush.msra.mxu0 0.0
      %949 = vmatpush.msra.mxu0 0.0
      %950 = vmatpush.msra.mxu0 0.0
      %951 = vmatpush.msra.mxu0 0.0
      %952 = vmatpush.msra.mxu0 %v454
      %953 = vmatpush.msra.mxu0 %v453
      %954 = vmatmul.f32.gmra.mxu0 %v936
      %v955 = vpop.f32.mrf.mxu0
      %v956 = vadd.f32 %v794, %v955
      %957 = vdwg.mxu0
      %v958 = vsel %vm507, %v956, 0.0
      %959 = vadd.xlane.f32.xlu0 %v958
      %v960 = vpop.xlane.xlu0 %959
      %v961 = vmul.f32 %v960, %v526
      %v962 = vsub.f32 %v956, %v961
      %v963 = vmul.f32 %v962, %v962
      %v964 = vsel %vm507, %v963, 0.0
      %965 = vadd.xlane.f32.xlu0 %v964
      %v966 = vpop.xlane.xlu0 %965
      %v967 = vmul.f32 %v966, %v526
      %v968 = vadd.f32 %v967, 1e-05
      %v969 = vrsqrt.pop %v968
      %v970 = vmul.f32 %v969, %v968
      %v971 = vmul.f32 %v970, %v969
      %v972 = vmul.f32 0.5, %v971
      %v973 = vsub.f32 1.5, %v972
      %v974 = vmul.f32 %v969, %v973
      %vm975 = vweird.f32 %v968
      %vm976 = vweird.f32 %v969
      %vm977 = vmor %vm975, %vm976
      %v978 = vsel %vm977, %v969, %v974
      %v979 = vmul.f32 %v962, %v978
      %v980 = vmul.f32 %v979, %v842
      %v981 = vadd.f32 %v980, %v846
      %983 = vrot.lane.b32.xlu0 %v956, 96
      %v984 = vpop.permute.xlu0 %983
      %v986 = vsel %vm463, %v984, 0.0
      %987 = vadd.xlane.f32.xlu0 %v986
      %v988 = vpop.xlane.xlu0 %987
      %v989 = vmul.f32 %v988, %v657
      %v990 = vsub.f32 %v956, %v989
      %v991 = vmul.f32 %v990, %v990
      %993 = vrot.lane.b32.xlu0 %v991, 96
      %v994 = vpop.permute.xlu0 %993
      %v996 = vsel %vm463, %v994, 0.0
      %997 = vadd.xlane.f32.xlu0 %v996
      %v998 = vpop.xlane.xlu0 %997
      %v999 = vmul.f32 %v998, %v657
      %v1000 = vadd.f32 %v999, 1e-05
      %v1001 = vrsqrt.pop %v1000
      %v1002 = vmul.f32 %v1001, %v1000
      %v1003 = vmul.f32 %v1002, %v1001
      %v1004 = vmul.f32 0.5, %v1003
      %v1005 = vsub.f32 1.5, %v1004
      %v1006 = vmul.f32 %v1001, %v1005
      %vm1007 = vweird.f32 %v1000
      %vm1008 = vweird.f32 %v1001
      %vm1009 = vmor %vm1007, %vm1008
      %v1010 = vsel %vm1009, %v1001, %v1006
      %v1011 = vmul.f32 %v990, %v1010
      %v1012 = vmul.f32 %v1011, %v882
      %v1013 = vadd.f32 %v1012, %v888
      %s1014 = scalar_lea.vmem [#allocation3], 8
      %v1015 = vld [vmem:[%s1014] sm:$0xff]
      %v1016 = vadd.f32 %v1015, %v981
      %v1017 = vxor.u32 %v1016, 2147483648
      %v1018 = vmul.f32 %v1017, 1.442695
      %v1019 = vpow.pop %v1018
      %v1020 = vadd.f32 %v1019, 1.0
      %v1021 = vrcp.pop %v1020
      %v1022 = vmul.f32 %v1020, %v1021
      %v1023 = vsub.f32 1.0, %v1022
      %v1024 = vmul.f32 %v1021, %v1023
      %v1025 = vadd.f32 %v1021, %v1024
      %vm1026 = vweird.f32 %v1020
      %vm1027 = vweird.f32 %v1021
      %vm1028 = vmor %vm1026, %vm1027
      %v1029 = vsel %vm1028, %v1021, %v1025
      %v1030 = vand.u32 2147483647, %v1020
      %vm1031 = vcmp.eq.f32.partialorder %v1030, 8.507059e+37
      %v1032 = vand.u32 %v1020, 2147483648
      %v1033 = vor.u32 1.1754944e-38, %v1032
      %v1034 = vsel %vm1031, %v1033, %v1029
      %v1035 = vmul.f32 1.0, %v1034
      %s1036 = scalar_lea.vmem [#allocation4], 8
      %v1037 = vld [vmem:[%s1036] sm:$0xff]
      %1039 = vrot.lane.b32.xlu0 %v1013, 96
      %v1040 = vpop.permute.xlu0 %1039
      %v1042 = vmul.f32 %v1035, %v1040
      %v1043 = vadd.f32 %v1037, %v1042
      %v1044 = vtanh.pop %v1043
      %v1045 = vsub.f32 1.0, %v1035
      %1047 = vrot.lane.b32.xlu0 %v1044, 16
      %v1048 = vpop.permute.xlu0 %1047
      %v1050 = vmul.f32 %v1045, %v1048
      %v1051 = vmul.f32 %v1035, %v930
      %v1052 = vadd.f32 %v1050, %v1051
      %1054 = vrot.lane.b32.xlu0 %v1052, 112
      %v1055 = vpop.permute.xlu0 %1054
      %s1057 = scalar_lea.vmem %s442, 8
      %1058 = vst.msk [vmem:[%s1057] sm:$0xff] %vm463, %v1055
      %v1059 = vsel %vm463, %v1055, 0
      %1061 = vmatpush.msra.mxu0 0.0
      %1062 = vmatpush.msra.mxu0 0.0
      %1063 = vmatpush.msra.mxu0 0.0
      %1064 = vmatpush.msra.mxu0 0.0
      %1065 = vmatpush.msra.mxu0 0.0
      %1066 = vmatpush.msra.mxu0 0.0
      %1067 = vmatpush.msra.mxu0 0.0
      %1068 = vmatpush.msra.mxu0 0.0
      %1069 = vmatpush.msra.mxu0 0.0
      %1070 = vmatpush.msra.mxu0 0.0
      %1071 = vmatpush.msra.mxu0 0.0
      %1072 = vmatpush.msra.mxu0 0.0
      %1073 = vmatpush.msra.mxu0 0.0
      %1074 = vmatpush.msra.mxu0 0.0
      %1075 = vmatpush.msra.mxu0 %v454
      %1076 = vmatpush.msra.mxu0 %v453
      %1077 = vmatmul.f32.gmra.mxu0 %v1059
      %v1078 = vpop.f32.mrf.mxu0
      %v1079 = vadd.f32 %v794, %v1078
      %1080 = vdwg.mxu0
      %v1081 = vsel %vm507, %v1079, 0.0
      %1082 = vadd.xlane.f32.xlu0 %v1081
      %v1083 = vpop.xlane.xlu0 %1082
      %v1084 = vmul.f32 %v1083, %v526
      %v1085 = vsub.f32 %v1079, %v1084
      %v1086 = vmul.f32 %v1085, %v1085
      %v1087 = vsel %vm507, %v1086, 0.0
      %1088 = vadd.xlane.f32.xlu0 %v1087
      %v1089 = vpop.xlane.xlu0 %1088
      %v1090 = vmul.f32 %v1089, %v526
      %v1091 = vadd.f32 %v1090, 1e-05
      %v1092 = vrsqrt.pop %v1091
      %v1093 = vmul.f32 %v1092, %v1091
      %v1094 = vmul.f32 %v1093, %v1092
      %v1095 = vmul.f32 0.5, %v1094
      %v1096 = vsub.f32 1.5, %v1095
      %v1097 = vmul.f32 %v1092, %v1096
      %vm1098 = vweird.f32 %v1091
      %vm1099 = vweird.f32 %v1092
      %vm1100 = vmor %vm1098, %vm1099
      %v1101 = vsel %vm1100, %v1092, %v1097
      %v1102 = vmul.f32 %v1085, %v1101
      %v1103 = vmul.f32 %v1102, %v842
      %v1104 = vadd.f32 %v1103, %v846
      %1106 = vrot.lane.b32.xlu0 %v1079, 96
      %v1107 = vpop.permute.xlu0 %1106
      %v1109 = vsel %vm463, %v1107, 0.0
      %1110 = vadd.xlane.f32.xlu0 %v1109
      %v1111 = vpop.xlane.xlu0 %1110
      %v1112 = vmul.f32 %v1111, %v657
      %v1113 = vsub.f32 %v1079, %v1112
      %v1114 = vmul.f32 %v1113, %v1113
      %1116 = vrot.lane.b32.xlu0 %v1114, 96
      %v1117 = vpop.permute.xlu0 %1116
      %v1119 = vsel %vm463, %v1117, 0.0
      %1120 = vadd.xlane.f32.xlu0 %v1119
      %v1121 = vpop.xlane.xlu0 %1120
      %v1122 = vmul.f32 %v1121, %v657
      %v1123 = vadd.f32 %v1122, 1e-05
      %v1124 = vrsqrt.pop %v1123
      %v1125 = vmul.f32 %v1124, %v1123
      %v1126 = vmul.f32 %v1125, %v1124
      %v1127 = vmul.f32 0.5, %v1126
      %v1128 = vsub.f32 1.5, %v1127
      %v1129 = vmul.f32 %v1124, %v1128
      %vm1130 = vweird.f32 %v1123
      %vm1131 = vweird.f32 %v1124
      %vm1132 = vmor %vm1130, %vm1131
      %v1133 = vsel %vm1132, %v1124, %v1129
      %v1134 = vmul.f32 %v1113, %v1133
      %v1135 = vmul.f32 %v1134, %v882
      %v1136 = vadd.f32 %v1135, %v888
      %s1137 = scalar_lea.vmem [#allocation3], 16
      %v1138 = vld [vmem:[%s1137] sm:$0xff]
      %v1139 = vadd.f32 %v1138, %v1104
      %v1140 = vxor.u32 %v1139, 2147483648
      %v1141 = vmul.f32 %v1140, 1.442695
      %v1142 = vpow.pop %v1141
      %v1143 = vadd.f32 %v1142, 1.0
      %v1144 = vrcp.pop %v1143
      %v1145 = vmul.f32 %v1143, %v1144
      %v1146 = vsub.f32 1.0, %v1145
      %v1147 = vmul.f32 %v1144, %v1146
      %v1148 = vadd.f32 %v1144, %v1147
      %vm1149 = vweird.f32 %v1143
      %vm1150 = vweird.f32 %v1144
      %vm1151 = vmor %vm1149, %vm1150
      %v1152 = vsel %vm1151, %v1144, %v1148
      %v1153 = vand.u32 2147483647, %v1143
      %vm1154 = vcmp.eq.f32.partialorder %v1153, 8.507059e+37
      %v1155 = vand.u32 %v1143, 2147483648
      %v1156 = vor.u32 1.1754944e-38, %v1155
      %v1157 = vsel %vm1154, %v1156, %v1152
      %v1158 = vmul.f32 1.0, %v1157
      %s1159 = scalar_lea.vmem [#allocation4], 16
      %v1160 = vld [vmem:[%s1159] sm:$0xff]
      %1162 = vrot.lane.b32.xlu0 %v1136, 96
      %v1163 = vpop.permute.xlu0 %1162
      %v1165 = vmul.f32 %v1158, %v1163
      %v1166 = vadd.f32 %v1160, %v1165
      %v1167 = vtanh.pop %v1166
      %v1168 = vsub.f32 1.0, %v1158
      %1170 = vrot.lane.b32.xlu0 %v1167, 16
      %v1171 = vpop.permute.xlu0 %1170
      %v1173 = vmul.f32 %v1168, %v1171
      %v1174 = vmul.f32 %v1158, %v1052
      %v1175 = vadd.f32 %v1173, %v1174
      %1177 = vrot.lane.b32.xlu0 %v1175, 112
      %v1178 = vpop.permute.xlu0 %1177
      %s1180 = scalar_lea.vmem %s442, 16
      %1181 = vst.msk [vmem:[%s1180] sm:$0xff] %vm463, %v1178
      %v1182 = vsel %vm463, %v1178, 0
      %1184 = vmatpush.msra.mxu0 0.0
      %1185 = vmatpush.msra.mxu0 0.0
      %1186 = vmatpush.msra.mxu0 0.0
      %1187 = vmatpush.msra.mxu0 0.0
      %1188 = vmatpush.msra.mxu0 0.0
      %1189 = vmatpush.msra.mxu0 0.0
      %1190 = vmatpush.msra.mxu0 0.0
      %1191 = vmatpush.msra.mxu0 0.0
      %1192 = vmatpush.msra.mxu0 0.0
      %1193 = vmatpush.msra.mxu0 0.0
      %1194 = vmatpush.msra.mxu0 0.0
      %1195 = vmatpush.msra.mxu0 0.0
      %1196 = vmatpush.msra.mxu0 0.0
      %1197 = vmatpush.msra.mxu0 0.0
      %1198 = vmatpush.msra.mxu0 %v454
      %1199 = vmatpush.msra.mxu0 %v453
      %1200 = vmatmul.f32.gmra.mxu0 %v1182
      %v1201 = vpop.f32.mrf.mxu0
      %v1202 = vadd.f32 %v794, %v1201
      %1203 = vdwg.mxu0
      %v1204 = vsel %vm507, %v1202, 0.0
      %1205 = vadd.xlane.f32.xlu0 %v1204
      %v1206 = vpop.xlane.xlu0 %1205
      %v1207 = vmul.f32 %v1206, %v526
      %v1208 = vsub.f32 %v1202, %v1207
      %v1209 = vmul.f32 %v1208, %v1208
      %v1210 = vsel %vm507, %v1209, 0.0
      %1211 = vadd.xlane.f32.xlu0 %v1210
      %v1212 = vpop.xlane.xlu0 %1211
      %v1213 = vmul.f32 %v1212, %v526
      %v1214 = vadd.f32 %v1213, 1e-05
      %v1215 = vrsqrt.pop %v1214
      %v1216 = vmul.f32 %v1215, %v1214
      %v1217 = vmul.f32 %v1216, %v1215
      %v1218 = vmul.f32 0.5, %v1217
      %v1219 = vsub.f32 1.5, %v1218
      %v1220 = vmul.f32 %v1215, %v1219
      %vm1221 = vweird.f32 %v1214
      %vm1222 = vweird.f32 %v1215
      %vm1223 = vmor %vm1221, %vm1222
      %v1224 = vsel %vm1223, %v1215, %v1220
      %v1225 = vmul.f32 %v1208, %v1224
      %v1226 = vmul.f32 %v1225, %v842
      %v1227 = vadd.f32 %v1226, %v846
      %1229 = vrot.lane.b32.xlu0 %v1202, 96
      %v1230 = vpop.permute.xlu0 %1229
      %v1232 = vsel %vm463, %v1230, 0.0
      %1233 = vadd.xlane.f32.xlu0 %v1232
      %v1234 = vpop.xlane.xlu0 %1233
      %v1235 = vmul.f32 %v1234, %v657
      %v1236 = vsub.f32 %v1202, %v1235
      %v1237 = vmul.f32 %v1236, %v1236
      %1239 = vrot.lane.b32.xlu0 %v1237, 96
      %v1240 = vpop.permute.xlu0 %1239
      %v1242 = vsel %vm463, %v1240, 0.0
      %1243 = vadd.xlane.f32.xlu0 %v1242
      %v1244 = vpop.xlane.xlu0 %1243
      %v1245 = vmul.f32 %v1244, %v657
      %v1246 = vadd.f32 %v1245, 1e-05
      %v1247 = vrsqrt.pop %v1246
      %v1248 = vmul.f32 %v1247, %v1246
      %v1249 = vmul.f32 %v1248, %v1247
      %v1250 = vmul.f32 0.5, %v1249
      %v1251 = vsub.f32 1.5, %v1250
      %v1252 = vmul.f32 %v1247, %v1251
      %vm1253 = vweird.f32 %v1246
      %vm1254 = vweird.f32 %v1247
      %vm1255 = vmor %vm1253, %vm1254
      %v1256 = vsel %vm1255, %v1247, %v1252
      %v1257 = vmul.f32 %v1236, %v1256
      %v1258 = vmul.f32 %v1257, %v882
      %v1259 = vadd.f32 %v1258, %v888
      %s1260 = scalar_lea.vmem [#allocation3], 24
      %v1261 = vld [vmem:[%s1260] sm:$0xff]
      %v1262 = vadd.f32 %v1261, %v1227
      %v1263 = vxor.u32 %v1262, 2147483648
      %v1264 = vmul.f32 %v1263, 1.442695
      %v1265 = vpow.pop %v1264
      %v1266 = vadd.f32 %v1265, 1.0
      %v1267 = vrcp.pop %v1266
      %v1268 = vmul.f32 %v1266, %v1267
      %v1269 = vsub.f32 1.0, %v1268
      %v1270 = vmul.f32 %v1267, %v1269
      %v1271 = vadd.f32 %v1267, %v1270
      %vm1272 = vweird.f32 %v1266
      %vm1273 = vweird.f32 %v1267
      %vm1274 = vmor %vm1272, %vm1273
      %v1275 = vsel %vm1274, %v1267, %v1271
      %v1276 = vand.u32 2147483647, %v1266
      %vm1277 = vcmp.eq.f32.partialorder %v1276, 8.507059e+37
      %v1278 = vand.u32 %v1266, 2147483648
      %v1279 = vor.u32 1.1754944e-38, %v1278
      %v1280 = vsel %vm1277, %v1279, %v1275
      %v1281 = vmul.f32 1.0, %v1280
      %s1282 = scalar_lea.vmem [#allocation4], 24
      %v1283 = vld [vmem:[%s1282] sm:$0xff]
      %1285 = vrot.lane.b32.xlu0 %v1259, 96
      %v1286 = vpop.permute.xlu0 %1285
      %v1288 = vmul.f32 %v1281, %v1286
      %v1289 = vadd.f32 %v1283, %v1288
      %v1290 = vtanh.pop %v1289
      %v1291 = vsub.f32 1.0, %v1281
      %1293 = vrot.lane.b32.xlu0 %v1290, 16
      %v1294 = vpop.permute.xlu0 %1293
      %v1296 = vmul.f32 %v1291, %v1294
      %v1297 = vmul.f32 %v1281, %v1175
      %v1298 = vadd.f32 %v1296, %v1297
      %1300 = vrot.lane.b32.xlu0 %v1298, 112
      %v1301 = vpop.permute.xlu0 %1300
      %s1303 = scalar_lea.vmem %s442, 24
      %1304 = vst.msk [vmem:[%s1303] sm:$0xff] %vm463, %v1301
      %1305 = vst.msk [vmem:[#allocation2] sm:$0xff] %vm463, %v1301
      %s1306 = smul.u32 4, %s24
      %p1307 = scmp.lt.s32.totalorder %s1306, 7
      %s1308 = scalar_select %p1307, %s1306, 7
      %s1309 = smul.addr %s1308, 8
      %s1310 = scalar_lea.vmem %s13, %s1309
      // Predicated region
      $region77: #{gru_forward.1} parent=71 // pred_check
        %p1311 = pneg %p320
      $region78: #{gru_forward.1} parent=71 // pred_check_branch
        %1313 = sbr.rel (%p1311) target = $region80
      $region79: #{gru_forward.1} parent=71 // pred_region
        %s1314 = smul.u32 4, %s24
      $region80: #{gru_forward.1} parent=71 // pred_fallthru
        _
    $region72: #{gru_forward.1} parent=5 // pred_fallthru
      _
    %p1315 = scmp.le.s32.totalorder 2, %s19
    // Predicated region
    $region81: #{gru_forward.1} parent=5 // pred_check
      %p1316 = pneg %p1315
    $region82: #{gru_forward.1} parent=5 // pred_check_branch
      %1318 = sbr.rel (%p1316) target = $region84
    $region83: #{gru_forward.1} parent=5 // pred_region
      %s1319 = ssub.s32 %s19, 2
      // Predicated region
      $region85: #{gru_forward.1} parent=83 // pred_check
        %p1320 = pneg %p326
      $region86: #{gru_forward.1} parent=83 // pred_check_branch
        %1322 = sbr.rel (%p1320) target = $region88
      $region87: #{gru_forward.1} parent=83 // pred_region
        %s1323 = smul.u32 4, %s25
        %p1324 = scmp.lt.s32.totalorder %s1323, 7
        %s1325 = scalar_select %p1324, %s1323, 7
        %s1326 = smul.addr %s1325, 8
        %s1327 = scalar_lea.vmem %s13, %s1326
      $region88: #{gru_forward.1} parent=83 // pred_fallthru
        _
    $region84: #{gru_forward.1} parent=5 // pred_fallthru
      _
  $region6: #{gru_forward.1} parent=0 // loop_footer
    %s23 = sadd.s32 1, %s19
  $region7: #{gru_forward.1} parent=0 // loop_footer_branch
    %18 = sbr.rel target = $region3
  $region8: #{gru_forward.1} parent=0 // loop_exit
    _

</llo_original>
